<compile_context>
chip_gen: v5e
topology: v5e:2x2
jax: 0.10.0
libtpu: 0.0.40
codegen_flags: <defaults>
</compile_context>

<pallas_src>
import functools

import jax
import jax.numpy as jnp
from jax import lax
from jax.experimental import pallas as pl
from jax.experimental.pallas import tpu as pltpu

EPS = 1e-5                      # nn.BatchNorm2d default eps
_VMEM_LIMIT = 32 * 1024 * 1024  # safe on v5e / v6e / v7x; blocks are sized << this


# ---------------------------------------------------------------------------
# Row-block size: keep the f32 accumulator (th*W_out, Cout) around 64-128 KB of
# vregs while keeping (th*W_out) a multiple of 8 (sublane constraint) and a
# divisor of H_out (so BN stats never see padded rows).
# ---------------------------------------------------------------------------
def _pick_row_block(h_out, w_out, cout):
    target_rows = max(8, min(512, (128 * 1024) // (4 * max(cout, 1))))
    cands = [t for t in range(1, h_out + 1)
             if h_out % t == 0 and (t * w_out) % 8 == 0]
    if not cands:
        return h_out                       # whole-sample block (always legal)
    small = [t for t in cands if t * w_out <= target_rows]
    return max(small) if small else min(cands)


# ---------------------------------------------------------------------------
# Kernel 1: fused conv (+bias) + per-row-block BN partial statistics.
# Grid: (batch, row-blocks), both "parallel".
# ---------------------------------------------------------------------------
def _conv_bn_stats_kernel(*refs, kh, kw, dil, th, w_out, has_bias):
    """
    xp_ref    : (1, Hp, Wp, Cin)        padded NHWC input, bf16 (whole sample, resident)
    w_ref     : (kh*kw*Cin, Cout)       weights, bf16
    b_ref     : (1, Cout)               conv bias, f32 (only when has_bias)
    y_ref     : (1, th*W_out, Cout)     pre-BN conv output block, bf16
    stats_ref : (1, 1, 2, Cout)         [channel sum ; channel sum-of-squares], f32
    """
    if has_bias:
        xp_ref, w_ref, b_ref, y_ref, stats_ref = refs
    else:
        xp_ref, w_ref, y_ref, stats_ref = refs
        b_ref = None

    cin = xp_ref.shape[-1]
    m_tile = th * w_out
    r0 = pl.program_id(1) * th            # first output row of this block

    # In-VMEM im2col: build one lane-dense (m_tile, kh*kw*Cin) operand by
    # concatenating the dilated taps along the channel/lane axis, then do a
    # single K = kh*kw*Cin MXU matmul with f32 accumulation.
    taps = []
    for ky in range(kh):
        rows = xp_ref[0, pl.ds(r0 + ky * dil, th), :, :]        # (th, Wp, Cin)
        for kx in range(kw):
            taps.append(rows[:, kx * dil:kx * dil + w_out, :])  # (th, W_out, Cin)
    patch = taps[0] if len(taps) == 1 else jnp.concatenate(taps, axis=-1)
    patch = patch.reshape(m_tile, kh * kw * cin)                # (m_tile, K) bf16

    y = jnp.dot(patch, w_ref[...], preferred_element_type=jnp.float32)
    if has_bias:
        y = y + b_ref[...]

    y_ref[0] = y.astype(y_ref.dtype)                            # bf16 writeback

    # One-pass BN partial statistics for this block (f32).
    stats_ref[0, 0, 0:1, :] = jnp.sum(y, axis=0, keepdims=True)
    stats_ref[0, 0, 1:2, :] = jnp.sum(y * y, axis=0, keepdims=True)


def _conv_bn_stats(xp, w_flat, bias_row, *, kh, kw, dil, h_out, w_out, th,
                   has_bias):
    n, hp, wp, cin = xp.shape
    kcin, cout = w_flat.shape
    nb = h_out // th
    m_tile = th * w_out
    m_per = h_out * w_out

    kernel = functools.partial(_conv_bn_stats_kernel, kh=kh, kw=kw, dil=dil,
                               th=th, w_out=w_out, has_bias=has_bias)

    in_specs = [
        # Whole padded sample stays resident across row blocks (same block index).
        pl.BlockSpec((1, hp, wp, cin), lambda i, j: (i, 0, 0, 0)),
        pl.BlockSpec((kcin, cout), lambda i, j: (0, 0)),
    ]
    args = [xp, w_flat]
    if has_bias:
        in_specs.append(pl.BlockSpec((1, cout), lambda i, j: (0, 0)))
        args.append(bias_row)

    grid_spec = pltpu.PrefetchScalarGridSpec(
        num_scalar_prefetch=0,
        grid=(n, nb),
        in_specs=in_specs,
        out_specs=(
            pl.BlockSpec((1, m_tile, cout), lambda i, j: (i, j, 0)),
            pl.BlockSpec((1, 1, 2, cout), lambda i, j: (i, j, 0, 0)),
        ),
    )
    return pl.pallas_call(
        kernel,
        out_shape=(jax.ShapeDtypeStruct((n, m_per, cout), jnp.bfloat16),
                   jax.ShapeDtypeStruct((n, nb, 2, cout), jnp.float32)),
        grid_spec=grid_spec,
        compiler_params=pltpu.CompilerParams(
            dimension_semantics=("parallel", "parallel"),   # 2-TC megacore on v7x
            vmem_limit_bytes=_VMEM_LIMIT),
    )(*args)


# ---------------------------------------------------------------------------
# Kernel 2: folded BN (scale/shift) + ReLU, lane-dense, bf16 in / f32 out.
# ---------------------------------------------------------------------------
def _scale_shift_relu_kernel(y_ref, s_ref, t_ref, o_ref, *, relu):
    y = y_ref[...].astype(jnp.float32) * s_ref[...] + t_ref[...]
    if relu:
        y = jnp.maximum(y, 0.0)
    o_ref[...] = y.astype(o_ref.dtype)


def _scale_shift_relu(y2d, scale_row, shift_row, *, relu):
    m, c = y2d.shape
    tm = m if m <= 512 else 512            # fixed tile; ragged last block is fine
    grid_spec = pltpu.PrefetchScalarGridSpec(
        num_scalar_prefetch=0,
        grid=(pl.cdiv(m, tm),),
        in_specs=[
            pl.BlockSpec((tm, c), lambda i: (i, 0)),
            pl.BlockSpec((1, c), lambda i: (0, 0)),
            pl.BlockSpec((1, c), lambda i: (0, 0)),
        ],
        out_specs=pl.BlockSpec((tm, c), lambda i: (i, 0)),
    )
    return pl.pallas_call(
        functools.partial(_scale_shift_relu_kernel, relu=relu),
        out_shape=jax.ShapeDtypeStruct((m, c), jnp.float32),
        grid_spec=grid_spec,
        compiler_params=pltpu.CompilerParams(
            dimension_semantics=("parallel",),
            vmem_limit_bytes=_VMEM_LIMIT),
    )(y2d, scale_row, shift_row)


# ---------------------------------------------------------------------------
# BasicConv forward (glue + kernel calls).
# ---------------------------------------------------------------------------
@functools.partial(jax.jit, static_argnames=("stride", "padding", "dilation",
                                             "groups", "relu", "bn"))
def basic_conv_forward(x_nchw, params, *, stride=1, padding=0, dilation=1,
                       groups=1, relu=True, bn=True):
    # TODO(synk): stride > 1 and grouped (groups > 1) Conv2d variants not implemented.
    assert stride == 1, "stride > 1 not implemented"
    assert groups == 1, "grouped conv not implemented"

    w = params["w"]                           # (Cout, Cin, kh, kw) f32
    cout, cin, kh, kw = w.shape
    n, cin_x, h, wd = x_nchw.shape
    assert cin_x == cin
    h_out = h + 2 * padding - dilation * (kh - 1)
    w_out = wd + 2 * padding - dilation * (kw - 1)
    m_total = n * h_out * w_out

    # NCHW -> NHWC, bf16 for the MXU, pad in bf16 (half the HBM pad traffic).
    x = jnp.transpose(x_nchw, (0, 2, 3, 1)).astype(jnp.bfloat16)
    if padding:
        x = jnp.pad(x, ((0, 0), (padding, padding), (padding, padding), (0, 0)))

    # (Cout, Cin, kh, kw) -> (kh*kw*Cin, Cout); row order (ky, kx, cin) matches
    # the in-kernel im2col tap concatenation order.
    w_flat = jnp.transpose(w, (2, 3, 1, 0)).reshape(kh * kw * cin, cout)
    w_flat = w_flat.astype(jnp.bfloat16)

    has_bias = params.get("b", None) is not None
    bias_row = (params["b"].reshape(1, cout).astype(jnp.float32)
                if has_bias else None)

    th = _pick_row_block(h_out, w_out, cout)
    y_pre, stats = _conv_bn_stats(x, w_flat, bias_row, kh=kh, kw=kw,
                                  dil=dilation, h_out=h_out, w_out=w_out,
                                  th=th, has_bias=has_bias)
    y2d = y_pre.reshape(m_total, cout)        # bf16 intermediate

    if bn:
        tot = jnp.sum(stats, axis=(0, 1))                        # (2, Cout) f32
        mean = tot[0] / m_total
        var = jnp.maximum(tot[1] / m_total - mean * mean, 0.0)   # biased (training-mode)
        rstd = lax.rsqrt(var + EPS)
        gamma = params["gamma"].reshape(-1).astype(jnp.float32)
        beta = params["beta"].reshape(-1).astype(jnp.float32)
        scale = (gamma * rstd).reshape(1, cout)
        shift = (beta - mean * gamma * rstd).reshape(1, cout)
    else:
        scale = jnp.ones((1, cout), jnp.float32)
        shift = jnp.zeros((1, cout), jnp.float32)

    if bn or relu:
        out2d = _scale_shift_relu(y2d, scale, shift, relu=relu)
    else:
        out2d = y2d.astype(jnp.float32)       # skip the elementwise pass entirely

    # Module contract is NCHW out; keep the final layout transpose in XLA.
    return jnp.transpose(out2d.reshape(n, h_out, w_out, cout), (0, 3, 1, 2))


# ---------------------------------------------------------------------------
# Parameter construction (deterministic, matches _init_weight).
# ---------------------------------------------------------------------------
def init_basic_conv_params(key, in_planes, out_planes, kernel_size,
                           bias=False, bn=True, bias_key=None):
    fan_in = in_planes * kernel_size * kernel_size      # kaiming_normal_, fan_in mode
    w = jax.random.normal(
        key, (out_planes, in_planes, kernel_size, kernel_size),
        jnp.float32) * jnp.sqrt(2.0 / fan_in)
    p = {"w": w}
    if bias:
        if bias_key is not None:
            p["b"] = 0.1 * jax.random.normal(bias_key, (out_planes,), jnp.float32)
        else:
            p["b"] = jnp.zeros((out_planes,), jnp.float32)
    if bn:
        p["gamma"] = jnp.ones((out_planes,), jnp.float32)   # m.weight.data.fill_(1)
        p["beta"] = jnp.zeros((out_planes,), jnp.float32)   # m.bias.data.zero_()
    return p


# ---------------------------------------------------------------------------
# Pure-JAX reference (f32) for correctness checking.
# ---------------------------------------------------------------------------
def basic_conv_reference(x_nchw, params, *, stride=1, padding=0, dilation=1,
                         relu=True, bn=True):
    w = params["w"]
    y = lax.conv_general_dilated(
        x_nchw, w, window_strides=(stride, stride),
        padding=((padding, padding), (padding, padding)),
        rhs_dilation=(dilation, dilation),
        dimension_numbers=("NCHW", "OIHW", "NCHW"))
    if params.get("b", None) is not None:
        y = y + params["b"][None, :, None, None]
    if bn:
        mean = jnp.mean(y, axis=(0, 2, 3), keepdims=True)
        var = jnp.var(y, axis=(0, 2, 3), keepdims=True)      # biased
        y = (y - mean) * lax.rsqrt(var + EPS)
        y = (y * params["gamma"][None, :, None, None]
             + params["beta"][None, :, None, None])
    if relu:
        y = jnp.maximum(y, 0.0)
    return y


if __name__ == "__main__":
    key = jax.random.PRNGKey(0)
    kx, kp1, kp2, kp3, kb = jax.random.split(key, 5)

    N, Cin, H, W = 2, 32, 32, 32
    Cout = 128
    x = jax.random.normal(kx, (N, Cin, H, W), jnp.float32)

    # Config A: dilated 3x3 BasicConv (padding=dilation=2), as used in ASPP.
    pA = init_basic_conv_params(kp1, Cin, Cout, kernel_size=3)
    yA = jax.block_until_ready(basic_conv_forward(x, pA, padding=2, dilation=2))
    refA = basic_conv_reference(x, pA, padding=2, dilation=2)
    errA = float(jnp.max(jnp.abs(yA - refA)))
    assert yA.shape == (N, Cout, H, W), yA.shape
    assert bool(jnp.all(jnp.isfinite(yA)))
    assert errA < 1e-1, f"3x3 dilated mismatch: {errA}"

    # Config B: 1x1 BasicConv.
    pB = init_basic_conv_params(kp2, Cin, Cout, kernel_size=1)
    yB = jax.block_until_ready(basic_conv_forward(x, pB, padding=0, dilation=1))
    refB = basic_conv_reference(x, pB, padding=0, dilation=1)
    errB = float(jnp.max(jnp.abs(yB - refB)))
    assert yB.shape == (N, Cout, H, W), yB.shape
    assert bool(jnp.all(jnp.isfinite(yB)))
    assert errB < 1e-1, f"1x1 mismatch: {errB}"

    # Config C: 3x3 with bias=True, bn=False, relu=True (exercises bias / no-BN paths).
    pC = init_basic_conv_params(kp3, Cin, Cout, kernel_size=3, bias=True,
                                bn=False, bias_key=kb)
    yC = jax.block_until_ready(
        basic_conv_forward(x, pC, padding=1, dilation=1, bn=False, relu=True))
    refC = basic_conv_reference(x, pC, padding=1, dilation=1, bn=False, relu=True)
    errC = float(jnp.max(jnp.abs(yC - refC)))
    assert yC.shape == (N, Cout, H, W), yC.shape
    assert bool(jnp.all(jnp.isfinite(yC)))
    assert errC < 1e-1, f"3x3 bias/no-bn mismatch: {errC}"

    print("KERNEL_OK")
</pallas_src>

<mosaic_0001>
module attributes {stable_mosaic.version = 11 : i64} {
  func.func @_conv_bn_stats_kernel(%arg0: i32, %arg1: i32, %arg2: memref<1x36x36x32xbf16, #tpu.memory_space<vmem>>, %arg3: memref<288x128xbf16, #tpu.memory_space<vmem>>, %arg4: memref<1x256x128xbf16, #tpu.memory_space<vmem>>, %arg5: memref<1x1x2x128xf32, #tpu.memory_space<vmem>>) attributes {dimension_semantics = [#tpu.dimension_semantics<parallel>, #tpu.dimension_semantics<parallel>], iteration_bounds = array<i64: 2, 4>, scalar_prefetch = 0 : i64, scratch_operands = 0 : i64, tpu.core_type = #tpu.core_type<tc>, window_params = [{transform_indices = @transform_0, window_bounds = array<i64: 1, 36, 36, 32>}, {pipeline_mode = #tpu.pipeline_mode<synchronous>, transform_indices = @transform_1, window_bounds = array<i64: 288, 128>}, {transform_indices = @transform_2, window_bounds = array<i64: 1, 256, 128>}, {transform_indices = @transform_3, window_bounds = array<i64: 1, 1, 2, 128>}]} {
    %c8_i32 = arith.constant 8 : i32
    %0 = arith.muli %arg1, %c8_i32 : i32
    %c0_i32 = arith.constant 0 : i32
    %1 = arith.addi %0, %c0_i32 : i32
    %c0 = arith.constant 0 : index
    %2 = arith.index_cast %1 : i32 to index
    %c0_0 = arith.constant 0 : index
    %c0_1 = arith.constant 0 : index
    %3 = vector.load %arg2[%c0, %2, %c0_0, %c0_1] : memref<1x36x36x32xbf16, #tpu.memory_space<vmem>>, vector<1x8x36x32xbf16>
    %4 = vector.shape_cast %3 : vector<1x8x36x32xbf16> to vector<8x36x32xbf16>
    %5 = vector.extract_strided_slice %4 {offsets = [0, 0, 0], sizes = [8, 32, 32], strides = [1, 1, 1]} : vector<8x36x32xbf16> to vector<8x32x32xbf16>
    %6 = vector.extract_strided_slice %4 {offsets = [0, 2, 0], sizes = [8, 32, 32], strides = [1, 1, 1]} : vector<8x36x32xbf16> to vector<8x32x32xbf16>
    %7 = vector.extract_strided_slice %4 {offsets = [0, 4, 0], sizes = [8, 32, 32], strides = [1, 1, 1]} : vector<8x36x32xbf16> to vector<8x32x32xbf16>
    %c2_i32 = arith.constant 2 : i32
    %8 = arith.addi %0, %c2_i32 : i32
    %c0_2 = arith.constant 0 : index
    %9 = arith.index_cast %8 : i32 to index
    %c0_3 = arith.constant 0 : index
    %c0_4 = arith.constant 0 : index
    %10 = vector.load %arg2[%c0_2, %9, %c0_3, %c0_4] : memref<1x36x36x32xbf16, #tpu.memory_space<vmem>>, vector<1x8x36x32xbf16>
    %11 = vector.shape_cast %10 : vector<1x8x36x32xbf16> to vector<8x36x32xbf16>
    %12 = vector.extract_strided_slice %11 {offsets = [0, 0, 0], sizes = [8, 32, 32], strides = [1, 1, 1]} : vector<8x36x32xbf16> to vector<8x32x32xbf16>
    %13 = vector.extract_strided_slice %11 {offsets = [0, 2, 0], sizes = [8, 32, 32], strides = [1, 1, 1]} : vector<8x36x32xbf16> to vector<8x32x32xbf16>
    %14 = vector.extract_strided_slice %11 {offsets = [0, 4, 0], sizes = [8, 32, 32], strides = [1, 1, 1]} : vector<8x36x32xbf16> to vector<8x32x32xbf16>
    %c4_i32 = arith.constant 4 : i32
    %15 = arith.addi %0, %c4_i32 : i32
    %c0_5 = arith.constant 0 : index
    %16 = arith.index_cast %15 : i32 to index
    %c0_6 = arith.constant 0 : index
    %c0_7 = arith.constant 0 : index
    %17 = vector.load %arg2[%c0_5, %16, %c0_6, %c0_7] : memref<1x36x36x32xbf16, #tpu.memory_space<vmem>>, vector<1x8x36x32xbf16>
    %18 = vector.shape_cast %17 : vector<1x8x36x32xbf16> to vector<8x36x32xbf16>
    %19 = vector.extract_strided_slice %18 {offsets = [0, 0, 0], sizes = [8, 32, 32], strides = [1, 1, 1]} : vector<8x36x32xbf16> to vector<8x32x32xbf16>
    %20 = vector.extract_strided_slice %18 {offsets = [0, 2, 0], sizes = [8, 32, 32], strides = [1, 1, 1]} : vector<8x36x32xbf16> to vector<8x32x32xbf16>
    %21 = vector.extract_strided_slice %18 {offsets = [0, 4, 0], sizes = [8, 32, 32], strides = [1, 1, 1]} : vector<8x36x32xbf16> to vector<8x32x32xbf16>
    %22 = tpu.concatenate %5, %6, %7, %12, %13, %14, %19, %20, %21 in 2 : vector<8x32x32xbf16>, vector<8x32x32xbf16>, vector<8x32x32xbf16>, vector<8x32x32xbf16>, vector<8x32x32xbf16>, vector<8x32x32xbf16>, vector<8x32x32xbf16>, vector<8x32x32xbf16>, vector<8x32x32xbf16> -> vector<8x32x288xbf16>
    %23 = vector.shape_cast %22 : vector<8x32x288xbf16> to vector<256x288xbf16>
    %c0_8 = arith.constant 0 : index
    %c0_9 = arith.constant 0 : index
    %24 = vector.load %arg3[%c0_8, %c0_9] : memref<288x128xbf16, #tpu.memory_space<vmem>>, vector<288x128xbf16>
    %cst = arith.constant dense<0.000000e+00> : vector<256x128xf32>
    %25 = tpu.matmul %23, %24, %cst {dimension_numbers = #tpu.dot_dimension_numbers<[1], [0], [0], [1], [0, 0, 1, 1], [], []>} : vector<256x288xbf16>, vector<288x128xbf16>, vector<256x128xf32> -> vector<256x128xf32>
    %26 = arith.truncf %25 : vector<256x128xf32> to vector<256x128xbf16>
    %c0_10 = arith.constant 0 : index
    %c0_11 = arith.constant 0 : index
    %c0_12 = arith.constant 0 : index
    %27 = vector.load %arg4[%c0_10, %c0_11, %c0_12] : memref<1x256x128xbf16, #tpu.memory_space<vmem>>, vector<1x256x128xbf16>
    %28 = vector.shape_cast %27 : vector<1x256x128xbf16> to vector<256x128xbf16>
    %29 = vector.shape_cast %26 : vector<256x128xbf16> to vector<1x256x128xbf16>
    tpu.vector_store %arg4[%c0_10, %c0_11, %c0_12], %29 {strides = array<i32>} : memref<1x256x128xbf16, #tpu.memory_space<vmem>>, vector<1x256x128xbf16>,
    %cst_13 = arith.constant dense<0.000000e+00> : vector<128xf32>
    %30 = vector.multi_reduction <add>, %25, %cst_13 [0] : vector<256x128xf32> to vector<128xf32>
    %31 = vector.shape_cast %30 : vector<128xf32> to vector<1x128xf32>
    %c0_14 = arith.constant 0 : index
    %c0_15 = arith.constant 0 : index
    %c0_16 = arith.constant 0 : index
    %c0_17 = arith.constant 0 : index
    %32 = vector.load %arg5[%c0_14, %c0_15, %c0_16, %c0_17] : memref<1x1x2x128xf32, #tpu.memory_space<vmem>>, vector<1x1x1x128xf32>
    %33 = vector.shape_cast %32 : vector<1x1x1x128xf32> to vector<1x128xf32>
    %34 = vector.shape_cast %31 : vector<1x128xf32> to vector<1x1x1x128xf32>
    tpu.vector_store %arg5[%c0_14, %c0_15, %c0_16, %c0_17], %34 {strides = array<i32>} : memref<1x1x2x128xf32, #tpu.memory_space<vmem>>, vector<1x1x1x128xf32>,
    %35 = arith.mulf %25, %25 : vector<256x128xf32>
    %cst_18 = arith.constant dense<0.000000e+00> : vector<128xf32>
    %36 = vector.multi_reduction <add>, %35, %cst_18 [0] : vector<256x128xf32> to vector<128xf32>
    %37 = vector.shape_cast %36 : vector<128xf32> to vector<1x128xf32>
    %c0_19 = arith.constant 0 : index
    %c0_20 = arith.constant 0 : index
    %c1 = arith.constant 1 : index
    %c0_21 = arith.constant 0 : index
    %38 = vector.load %arg5[%c0_19, %c0_20, %c1, %c0_21] : memref<1x1x2x128xf32, #tpu.memory_space<vmem>>, vector<1x1x1x128xf32>
    %39 = vector.shape_cast %38 : vector<1x1x1x128xf32> to vector<1x128xf32>
    %40 = vector.shape_cast %37 : vector<1x128xf32> to vector<1x1x1x128xf32>
    tpu.vector_store %arg5[%c0_19, %c0_20, %c1, %c0_21], %40 {strides = array<i32>} : memref<1x1x2x128xf32, #tpu.memory_space<vmem>>, vector<1x1x1x128xf32>,
    return
  }
  func.func @transform_0(%arg0: i32, %arg1: i32) -> (i32, i32, i32, i32) {
    %c0_i32 = arith.constant 0 : i32
    %c0_i32_0 = arith.constant 0 : i32
    %c0_i32_1 = arith.constant 0 : i32
    %c0_i32_2 = arith.constant 0 : i32
    return %arg0, %c0_i32, %c0_i32_0, %c0_i32_1 : i32, i32, i32, i32
  }
  func.func @transform_1(%arg0: i32, %arg1: i32) -> (i32, i32) {
    %c0_i32 = arith.constant 0 : i32
    %c0_i32_0 = arith.constant 0 : i32
    %c0_i32_1 = arith.constant 0 : i32
    return %c0_i32, %c0_i32_0 : i32, i32
  }
  func.func @transform_2(%arg0: i32, %arg1: i32) -> (i32, i32, i32) {
    %c0_i32 = arith.constant 0 : i32
    %c0_i32_0 = arith.constant 0 : i32
    return %arg0, %arg1, %c0_i32 : i32, i32, i32
  }
  func.func @transform_3(%arg0: i32, %arg1: i32) -> (i32, i32, i32, i32) {
    %c0_i32 = arith.constant 0 : i32
    %c0_i32_0 = arith.constant 0 : i32
    %c0_i32_1 = arith.constant 0 : i32
    return %arg0, %arg1, %c0_i32, %c0_i32_0 : i32, i32, i32, i32
  }
}

module attributes {stable_mosaic.version = 11 : i64} {
  func.func @_scale_shift_relu_kernel(%arg0: i32, %arg1: memref<512x128xbf16, #tpu.memory_space<vmem>>, %arg2: memref<1x128xf32, #tpu.memory_space<vmem>>, %arg3: memref<1x128xf32, #tpu.memory_space<vmem>>, %arg4: memref<512x128xf32, #tpu.memory_space<vmem>>) attributes {dimension_semantics = [#tpu.dimension_semantics<parallel>], iteration_bounds = array<i64: 4>, scalar_prefetch = 0 : i64, scratch_operands = 0 : i64, tpu.core_type = #tpu.core_type<tc>, window_params = [{transform_indices = @transform_0, window_bounds = array<i64: 512, 128>}, {pipeline_mode = #tpu.pipeline_mode<synchronous>, transform_indices = @transform_1, window_bounds = array<i64: 1, 128>}, {pipeline_mode = #tpu.pipeline_mode<synchronous>, transform_indices = @transform_2, window_bounds = array<i64: 1, 128>}, {transform_indices = @transform_3, window_bounds = array<i64: 512, 128>}]} {
    %c0 = arith.constant 0 : index
    %c0_0 = arith.constant 0 : index
    %0 = vector.load %arg1[%c0, %c0_0] : memref<512x128xbf16, #tpu.memory_space<vmem>>, vector<512x128xbf16>
    %1 = arith.extf %0 : vector<512x128xbf16> to vector<512x128xf32>
    %c0_1 = arith.constant 0 : index
    %c0_2 = arith.constant 0 : index
    %2 = vector.load %arg2[%c0_1, %c0_2] : memref<1x128xf32, #tpu.memory_space<vmem>>, vector<1x128xf32>
    %3 = vector.broadcast %2 : vector<1x128xf32> to vector<512x128xf32>
    %4 = arith.mulf %1, %3 : vector<512x128xf32>
    %c0_3 = arith.constant 0 : index
    %c0_4 = arith.constant 0 : index
    %5 = vector.load %arg3[%c0_3, %c0_4] : memref<1x128xf32, #tpu.memory_space<vmem>>, vector<1x128xf32>
    %6 = vector.broadcast %5 : vector<1x128xf32> to vector<512x128xf32>
    %7 = arith.addf %4, %6 : vector<512x128xf32>
    %cst = arith.constant 0.000000e+00 : f32
    %8 = vector.broadcast %cst : f32 to vector<512x128xf32>
    %9 = arith.maximumf %7, %8 : vector<512x128xf32>
    %c0_5 = arith.constant 0 : index
    %c0_6 = arith.constant 0 : index
    %10 = vector.load %arg4[%c0_5, %c0_6] : memref<512x128xf32, #tpu.memory_space<vmem>>, vector<512x128xf32>
    tpu.vector_store %arg4[%c0_5, %c0_6], %9 {strides = array<i32>} : memref<512x128xf32, #tpu.memory_space<vmem>>, vector<512x128xf32>,
    return
  }
  func.func @transform_0(%arg0: i32) -> (i32, i32) {
    %c0_i32 = arith.constant 0 : i32
    %c0_i32_0 = arith.constant 0 : i32
    return %arg0, %c0_i32 : i32, i32
  }
  func.func @transform_1(%arg0: i32) -> (i32, i32) {
    %c0_i32 = arith.constant 0 : i32
    %c0_i32_0 = arith.constant 0 : i32
    %c0_i32_1 = arith.constant 0 : i32
    return %c0_i32, %c0_i32_0 : i32, i32
  }
  func.func @transform_2(%arg0: i32) -> (i32, i32) {
    %c0_i32 = arith.constant 0 : i32
    %c0_i32_0 = arith.constant 0 : i32
    %c0_i32_1 = arith.constant 0 : i32
    return %c0_i32, %c0_i32_0 : i32, i32
  }
  func.func @transform_3(%arg0: i32) -> (i32, i32) {
    %c0_i32 = arith.constant 0 : i32
    %c0_i32_0 = arith.constant 0 : i32
    return %arg0, %c0_i32 : i32, i32
  }
}

</mosaic_0001>

<llo_original>
// kernel: basic_conv_forward.3
$region0: #{basic_conv_forward.3}
  #allocation0 [shape = 'u32[]', space=smem, size = 0x4, offset = 0x4, fixed_abs, tag = 'smem constant byte address 0x4 - core index']
  #allocation1 [shape = 'u32[72,128]{1,0:T(1,128)}', space=vmem, size = 0x9000, scoped, tag = 'internal scratch']
  %s0 = inlined_call_operand.vmem [shape: bf16[2048,128], index: 0, kind: input, shape index: {}]
  %s1 = inlined_call_operand.vmem [shape: f32[1,128], index: 1, kind: input, shape index: {}]
  %s2 = inlined_call_operand.vmem [shape: f32[1,128], index: 2, kind: input, shape index: {}]
  %s3 = inlined_call_operand.hbm [shape: f32[2048,128], index: 3, kind: output, shape index: {}]
  %s4 = sld [smem:[#allocation0]]
  $region45: #{basic_conv_forward.3} parent=0
    _
  %s6 = ssub.s32 1, %s4
  %s7 = scalar_select 0, %s6, %s4
  $region1: #{basic_conv_forward.3} parent=0
    #allocation2 [shape = 'u8[524288]{0}', space=vmem, size = 0x80000, scoped, tag = 'output window, operand 0']
    #allocation3 [shape = 's32[2]{0}', space=sflag, size = 0x8, scoped, tag = 'scoped memory for basic_conv_forward.3']
    %8 = vsyncpa [#allocation3], 0
    %s9 = scalar_lea.sflag [#allocation3], 1
    %10 = vsyncpa %s9, 0
    loop: start=0, step=1, limit=6
    $region2: #{basic_conv_forward.3} parent=1 // loop_pre_header
      _
    $region3: #{basic_conv_forward.3} parent=1 // loop_header
      %s12 = sphi 0, %s16
      %p13 = scmp.ge.s32.totalorder %s12, 6
      %s22 = sphi 0, %s24
      %s25 = sphi 0, %s22
      %s26 = sphi 0, %s25
      %s42 = sphi 0, %s26
      %s46 = sphi 0, %s46
      %s48 = sphi 0, %s46
      %s49 = sphi 0, %s48
      %s63 = sphi 0, %s49
      %s67 = sphi 0, %s67
      %s69 = sphi 0, %s67
      %s70 = sphi 0, %s69
      %s84 = sphi 0, %s70
      %s90 = sphi 0, %s92
      %s93 = sphi 0, %s90
      %s94 = sphi 0, %s93
      %s110 = sphi 0, %s94
    $region4: #{basic_conv_forward.3} parent=1 // loop_header_branch
      %15 = sbr.rel (%p13) target = $region8
    $region5: #{basic_conv_forward.3} parent=1 // loop_body
      %s17 = ssub.s32 %s12, 1
      %s18 = ssub.s32 %s12, 2
      %s19 = sadd.s32 %s12, 1
      %s20 = ssub.s32 %s12, %s19
      %p21 = scmp.eq.s32.totalorder %s20, 0
      %s23 = sadd.s32 %s22, 1
      %s24 = scalar_select %p21, %s22, %s23
      %p27 = pneg %p21
      %p28 = scmp.eq.s32.totalorder %s12, 3
      %p29 = por %p27, %p28
      %p30 = scmp.ne.s32.totalorder %s22, %s25
      %p31 = scmp.eq.s32.totalorder %s12, 0
      %p32 = por %p30, %p31
      %p33 = scmp.ne.s32.totalorder %s22, %s25
      %p34 = scmp.eq.s32.totalorder %s17, 3
      %p35 = por %p33, %p34
      %p36 = scmp.ne.s32.totalorder %s25, %s26
      %p37 = scmp.eq.s32.totalorder %s17, 0
      %p38 = por %p36, %p37
      %p39 = scmp.ne.s32.totalorder %s25, %s26
      %p40 = scmp.eq.s32.totalorder %s18, 3
      %p41 = por %p39, %p40
      %p43 = scmp.ne.s32.totalorder %s26, %s42
      %p44 = scmp.eq.s32.totalorder %s18, 0
      %p45 = por %p43, %p44
      %s47 = sadd.s32 %s46, 1
      %p50 = scmp.eq.s32.totalorder %s12, 3
      %p51 = scmp.ne.s32.totalorder %s46, %s48
      %p52 = scmp.eq.s32.totalorder %s12, 0
      %p53 = por %p51, %p52
      %p54 = scmp.ne.s32.totalorder %s46, %s48
      %p55 = scmp.eq.s32.totalorder %s17, 3
      %p56 = por %p54, %p55
      %p57 = scmp.ne.s32.totalorder %s48, %s49
      %p58 = scmp.eq.s32.totalorder %s17, 0
      %p59 = por %p57, %p58
      %p60 = scmp.ne.s32.totalorder %s48, %s49
      %p61 = scmp.eq.s32.totalorder %s18, 3
      %p62 = por %p60, %p61
      %p64 = scmp.ne.s32.totalorder %s49, %s63
      %p65 = scmp.eq.s32.totalorder %s18, 0
      %p66 = por %p64, %p65
      %s68 = sadd.s32 %s67, 1
      %p71 = scmp.eq.s32.totalorder %s12, 3
      %p72 = scmp.ne.s32.totalorder %s67, %s69
      %p73 = scmp.eq.s32.totalorder %s12, 0
      %p74 = por %p72, %p73
      %p75 = scmp.ne.s32.totalorder %s67, %s69
      %p76 = scmp.eq.s32.totalorder %s17, 3
      %p77 = por %p75, %p76
      %p78 = scmp.ne.s32.totalorder %s69, %s70
      %p79 = scmp.eq.s32.totalorder %s17, 0
      %p80 = por %p78, %p79
      %p81 = scmp.ne.s32.totalorder %s69, %s70
      %p82 = scmp.eq.s32.totalorder %s18, 3
      %p83 = por %p81, %p82
      %p85 = scmp.ne.s32.totalorder %s70, %s84
      %p86 = scmp.eq.s32.totalorder %s18, 0
      %p87 = por %p85, %p86
      %s88 = ssub.s32 %s12, %s19
      %p89 = scmp.eq.s32.totalorder %s88, 0
      %s91 = sadd.s32 %s90, 1
      %s92 = scalar_select %p89, %s90, %s91
      %p95 = pneg %p89
      %p96 = scmp.eq.s32.totalorder %s12, 3
      %p97 = por %p95, %p96
      %p98 = scmp.ne.s32.totalorder %s90, %s93
      %p99 = scmp.eq.s32.totalorder %s12, 0
      %p100 = por %p98, %p99
      %p101 = scmp.ne.s32.totalorder %s90, %s93
      %p102 = scmp.eq.s32.totalorder %s17, 3
      %p103 = por %p101, %p102
      %p104 = scmp.ne.s32.totalorder %s93, %s94
      %p105 = scmp.eq.s32.totalorder %s17, 0
      %p106 = por %p104, %p105
      %p107 = scmp.ne.s32.totalorder %s93, %s94
      %p108 = scmp.eq.s32.totalorder %s18, 3
      %p109 = por %p107, %p108
      %p111 = scmp.ne.s32.totalorder %s94, %s110
      %p112 = scmp.eq.s32.totalorder %s18, 0
      %p113 = por %p111, %p112
      %p114 = scmp.le.s32.totalorder 1, %s12
      %p115 = scmp.lt.s32.totalorder %s12, 5
      %p116 = pnand %p114, %p115
      %p117 = pneg %p116
      // Predicated region
      $region9: #{basic_conv_forward.3} parent=5 // pred_check
        _
      $region10: #{basic_conv_forward.3} parent=5 // pred_check_branch
        %119 = sbr.rel (%p116) target = $region12
      $region11: #{basic_conv_forward.3} parent=5 // pred_region
        %s120 = ssub.s32 %s12, 1
        // Predicated region
        $region13: #{basic_conv_forward.3} parent=11 // pred_check
          %p121 = pneg %p59
        $region14: #{basic_conv_forward.3} parent=11 // pred_check_branch
          %123 = sbr.rel (%p121) target = $region16
        $region15: #{basic_conv_forward.3} parent=11 // pred_region
          _
        $region16: #{basic_conv_forward.3} parent=11 // pred_fallthru
          _
        // Predicated region
        $region17: #{basic_conv_forward.3} parent=11 // pred_check
          %p124 = pneg %p80
        $region18: #{basic_conv_forward.3} parent=11 // pred_check_branch
          %126 = sbr.rel (%p124) target = $region20
        $region19: #{basic_conv_forward.3} parent=11 // pred_region
          _
        $region20: #{basic_conv_forward.3} parent=11 // pred_fallthru
          _
      $region12: #{basic_conv_forward.3} parent=5 // pred_fallthru
        _
      %p127 = scmp.lt.s32.totalorder %s12, 4
      // Predicated region
      $region21: #{basic_conv_forward.3} parent=5 // pred_check
        %p128 = pneg %p127
      $region22: #{basic_conv_forward.3} parent=5 // pred_check_branch
        %130 = sbr.rel (%p128) target = $region24
      $region23: #{basic_conv_forward.3} parent=5 // pred_region
        // Predicated region
        $region25: #{basic_conv_forward.3} parent=23 // pred_check
          %p131 = pneg %p32
        $region26: #{basic_conv_forward.3} parent=23 // pred_check_branch
          %133 = sbr.rel (%p131) target = $region28
        $region27: #{basic_conv_forward.3} parent=23 // pred_region
          %s134 = smul.u32 64, %s12
          %p135 = scmp.lt.s32.totalorder %s134, 255
          %s136 = scalar_select %p135, %s134, 255
          %s137 = smul.addr %s136, 4
          %s138 = scalar_lea.vmem %s0, %s137
          %s139 = smul.u32 64, %s12
        $region28: #{basic_conv_forward.3} parent=23 // pred_fallthru
          _
      $region24: #{basic_conv_forward.3} parent=5 // pred_fallthru
        _
      %p140 = scmp.le.s32.totalorder 1, %s12
      %p141 = scmp.lt.s32.totalorder %s12, 5
      %p142 = pnand %p140, %p141
      %p143 = pneg %p142
      // Predicated region
      $region29: #{basic_conv_forward.3} parent=5 // pred_check
        _
      $region30: #{basic_conv_forward.3} parent=5 // pred_check_branch
        %145 = sbr.rel (%p142) target = $region32
      $region31: #{basic_conv_forward.3} parent=5 // pred_region
        %s146 = ssub.s32 %s12, 1
        %s147 = smul.u32 64, %s17
        %p148 = scmp.lt.s32.totalorder %s147, 255
        %s149 = scalar_select %p148, %s147, 255
        %s150 = smul.addr %s149, 4
        %s151 = scalar_lea.vmem %s0, %s150
        %p152 = pneg %p38
        %p153 = pneg %p35
        %p154 = pneg %p59
        %p155 = pneg %p56
        %p156 = pneg %p80
        %p157 = pneg %p77
        %p158 = pneg %p106
        %p159 = pneg %p103
        %s160 = sand.u32 %s93, 1
        %s161 = scalar_lea.sflag [#allocation3], %s160
        %s162 = sand.u32 %s93, 1
        %s163 = smul.addr %s162, 512
        %s164 = scalar_lea.vmem [#allocation2], %s163
        %s165 = smul.u32 64, %s17
        %p166 = scmp.lt.s32.totalorder %s165, 255
        %s167 = scalar_select %p166, %s165, 255
        %s168 = smul.addr %s167, 4
        %s169 = scalar_lea.vmem %s0, %s168
        %s170 = smul.u32 64, %s17
        %s171 = smul.u32 64, %s17
        %v172 = vld [vmem:[%s169] sm:$0xf]
        %v173 = vld [vmem:[%s169 + $0x4] sm:$0xf]
        %v174 = vld [vmem:[%s169 + $0x8] sm:$0xf]
        %v175 = vld [vmem:[%s169 + $0xc] sm:$0xf]
        %v176 = vld [vmem:[%s169 + $0x10] sm:$0xf]
        %v177 = vld [vmem:[%s169 + $0x14] sm:$0xf]
        %v178 = vld [vmem:[%s169 + $0x18] sm:$0xf]
        %v179 = vld [vmem:[%s169 + $0x1c] sm:$0xf]
        %v180 = vld [vmem:[%s169 + $0x20] sm:$0xf]
        %v181 = vld [vmem:[%s169 + $0x24] sm:$0xf]
        %v182 = vld [vmem:[%s169 + $0x28] sm:$0xf]
        %v183 = vld [vmem:[%s169 + $0x2c] sm:$0xf]
        %v184 = vld [vmem:[%s169 + $0x30] sm:$0xf]
        %v185 = vld [vmem:[%s169 + $0x34] sm:$0xf]
        %v186 = vld [vmem:[%s169 + $0x38] sm:$0xf]
        %v187 = vld [vmem:[%s169 + $0x3c] sm:$0xf]
        %v188 = vld [vmem:[%s169 + $0x40] sm:$0xf]
        %v189 = vld [vmem:[%s169 + $0x44] sm:$0xf]
        %v190 = vld [vmem:[%s169 + $0x48] sm:$0xf]
        %v191 = vld [vmem:[%s169 + $0x4c] sm:$0xf]
        %v192 = vld [vmem:[%s169 + $0x50] sm:$0xf]
        %v193 = vld [vmem:[%s169 + $0x54] sm:$0xf]
        %v194 = vld [vmem:[%s169 + $0x58] sm:$0xf]
        %v195 = vld [vmem:[%s169 + $0x5c] sm:$0xf]
        %v196 = vld [vmem:[%s169 + $0x60] sm:$0xf]
        %v197 = vld [vmem:[%s169 + $0x64] sm:$0xf]
        %v198 = vld [vmem:[%s169 + $0x68] sm:$0xf]
        %v199 = vld [vmem:[%s169 + $0x6c] sm:$0xf]
        %v200 = vld [vmem:[%s169 + $0x70] sm:$0xf]
        %v201 = vld [vmem:[%s169 + $0x74] sm:$0xf]
        %v202 = vld [vmem:[%s169 + $0x78] sm:$0xf]
        %v203 = vld [vmem:[%s169 + $0x7c] sm:$0xf]
        %v204 = vld [vmem:[%s169 + $0x80] sm:$0xf]
        %v205 = vld [vmem:[%s169 + $0x84] sm:$0xf]
        %v206 = vld [vmem:[%s169 + $0x88] sm:$0xf]
        %v207 = vld [vmem:[%s169 + $0x8c] sm:$0xf]
        %v208 = vld [vmem:[%s169 + $0x90] sm:$0xf]
        %v209 = vld [vmem:[%s169 + $0x94] sm:$0xf]
        %v210 = vld [vmem:[%s169 + $0x98] sm:$0xf]
        %v211 = vld [vmem:[%s169 + $0x9c] sm:$0xf]
        %v212 = vld [vmem:[%s169 + $0xa0] sm:$0xf]
        %v213 = vld [vmem:[%s169 + $0xa4] sm:$0xf]
        %v214 = vld [vmem:[%s169 + $0xa8] sm:$0xf]
        %v215 = vld [vmem:[%s169 + $0xac] sm:$0xf]
        %v216 = vld [vmem:[%s169 + $0xb0] sm:$0xf]
        %v217 = vld [vmem:[%s169 + $0xb4] sm:$0xf]
        %v218 = vld [vmem:[%s169 + $0xb8] sm:$0xf]
        %v219 = vld [vmem:[%s169 + $0xbc] sm:$0xf]
        %v220 = vld [vmem:[%s169 + $0xc0] sm:$0xf]
        %v221 = vld [vmem:[%s169 + $0xc4] sm:$0xf]
        %v222 = vld [vmem:[%s169 + $0xc8] sm:$0xf]
        %v223 = vld [vmem:[%s169 + $0xcc] sm:$0xf]
        %v224 = vld [vmem:[%s169 + $0xd0] sm:$0xf]
        %v225 = vld [vmem:[%s169 + $0xd4] sm:$0xf]
        %v226 = vld [vmem:[%s169 + $0xd8] sm:$0xf]
        %v227 = vld [vmem:[%s169 + $0xdc] sm:$0xf]
        %v228 = vld [vmem:[%s169 + $0xe0] sm:$0xf]
        %v229 = vld [vmem:[%s169 + $0xe4] sm:$0xf]
        %v230 = vld [vmem:[%s169 + $0xe8] sm:$0xf]
        %v231 = vld [vmem:[%s169 + $0xec] sm:$0xf]
        %v232 = vld [vmem:[%s169 + $0xf0] sm:$0xf]
        %v233 = vld [vmem:[%s169 + $0xf4] sm:$0xf]
        %v234 = vld [vmem:[%s169 + $0xf8] sm:$0xf]
        %v235 = vld [vmem:[%s169 + $0xfc] sm:$0xf]
        %v236 = vunpack.c.l.bf16 %v172
        %v237 = vunpack.c.l.bf16 %v173
        %v238 = vunpack.c.l.bf16 %v174
        %v239 = vunpack.c.l.bf16 %v175
        %v240 = vunpack.c.l.bf16 %v176
        %v241 = vunpack.c.l.bf16 %v177
        %v242 = vunpack.c.l.bf16 %v178
        %v243 = vunpack.c.l.bf16 %v179
        %v244 = vunpack.c.l.bf16 %v180
        %v245 = vunpack.c.l.bf16 %v181
        %v246 = vunpack.c.l.bf16 %v182
        %v247 = vunpack.c.l.bf16 %v183
        %v248 = vunpack.c.l.bf16 %v184
        %v249 = vunpack.c.l.bf16 %v185
        %v250 = vunpack.c.l.bf16 %v186
        %v251 = vunpack.c.l.bf16 %v187
        %v252 = vunpack.c.l.bf16 %v188
        %v253 = vunpack.c.l.bf16 %v189
        %v254 = vunpack.c.l.bf16 %v190
        %v255 = vunpack.c.l.bf16 %v191
        %v256 = vunpack.c.l.bf16 %v192
        %v257 = vunpack.c.l.bf16 %v193
        %v258 = vunpack.c.l.bf16 %v194
        %v259 = vunpack.c.l.bf16 %v195
        %v260 = vunpack.c.l.bf16 %v196
        %v261 = vunpack.c.l.bf16 %v197
        %v262 = vunpack.c.l.bf16 %v198
        %v263 = vunpack.c.l.bf16 %v199
        %v264 = vunpack.c.l.bf16 %v200
        %v265 = vunpack.c.l.bf16 %v201
        %v266 = vunpack.c.l.bf16 %v202
        %v267 = vunpack.c.l.bf16 %v203
        %v268 = vunpack.c.l.bf16 %v204
        %v269 = vunpack.c.l.bf16 %v205
        %v270 = vunpack.c.l.bf16 %v206
        %v271 = vunpack.c.l.bf16 %v207
        %v272 = vunpack.c.l.bf16 %v208
        %v273 = vunpack.c.l.bf16 %v209
        %v274 = vunpack.c.l.bf16 %v210
        %v275 = vunpack.c.l.bf16 %v211
        %v276 = vunpack.c.l.bf16 %v212
        %v277 = vunpack.c.l.bf16 %v213
        %v278 = vunpack.c.l.bf16 %v214
        %v279 = vunpack.c.l.bf16 %v215
        %v280 = vunpack.c.l.bf16 %v216
        %v281 = vunpack.c.l.bf16 %v217
        %v282 = vunpack.c.l.bf16 %v218
        %v283 = vunpack.c.l.bf16 %v219
        %v284 = vunpack.c.l.bf16 %v220
        %v285 = vunpack.c.l.bf16 %v221
        %v286 = vunpack.c.l.bf16 %v222
        %v287 = vunpack.c.l.bf16 %v223
        %v288 = vunpack.c.l.bf16 %v224
        %v289 = vunpack.c.l.bf16 %v225
        %v290 = vunpack.c.l.bf16 %v226
        %v291 = vunpack.c.l.bf16 %v227
        %v292 = vunpack.c.l.bf16 %v228
        %v293 = vunpack.c.l.bf16 %v229
        %v294 = vunpack.c.l.bf16 %v230
        %v295 = vunpack.c.l.bf16 %v231
        %v296 = vunpack.c.l.bf16 %v232
        %v297 = vunpack.c.l.bf16 %v233
        %v298 = vunpack.c.l.bf16 %v234
        %v299 = vunpack.c.l.bf16 %v235
        %v300 = vld [vmem:[%s1] sm:$0x1]
        %v302 = vperm.slane %v300, 0
        %v304 = vmul.f32 %v236, %v302
        %v305 = vmul.f32 %v237, %v302
        %v306 = vmul.f32 %v238, %v302
        %v307 = vmul.f32 %v239, %v302
        %v308 = vmul.f32 %v240, %v302
        %v309 = vmul.f32 %v241, %v302
        %v310 = vmul.f32 %v242, %v302
        %v311 = vmul.f32 %v243, %v302
        %v312 = vmul.f32 %v244, %v302
        %v313 = vmul.f32 %v245, %v302
        %v314 = vmul.f32 %v246, %v302
        %v315 = vmul.f32 %v247, %v302
        %v316 = vmul.f32 %v248, %v302
        %v317 = vmul.f32 %v249, %v302
        %v318 = vmul.f32 %v250, %v302
        %v319 = vmul.f32 %v251, %v302
        %v320 = vmul.f32 %v252, %v302
        %v321 = vmul.f32 %v253, %v302
        %v322 = vmul.f32 %v254, %v302
        %v323 = vmul.f32 %v255, %v302
        %v324 = vmul.f32 %v256, %v302
        %v325 = vmul.f32 %v257, %v302
        %v326 = vmul.f32 %v258, %v302
        %v327 = vmul.f32 %v259, %v302
        %v328 = vmul.f32 %v260, %v302
        %v329 = vmul.f32 %v261, %v302
        %v330 = vmul.f32 %v262, %v302
        %v331 = vmul.f32 %v263, %v302
        %v332 = vmul.f32 %v264, %v302
        %v333 = vmul.f32 %v265, %v302
        %v334 = vmul.f32 %v266, %v302
        %v335 = vmul.f32 %v267, %v302
        %v336 = vmul.f32 %v268, %v302
        %v337 = vmul.f32 %v269, %v302
        %v338 = vmul.f32 %v270, %v302
        %v339 = vmul.f32 %v271, %v302
        %v340 = vmul.f32 %v272, %v302
        %v341 = vmul.f32 %v273, %v302
        %v342 = vmul.f32 %v274, %v302
        %v343 = vmul.f32 %v275, %v302
        %v344 = vmul.f32 %v276, %v302
        %v345 = vmul.f32 %v277, %v302
        %v346 = vmul.f32 %v278, %v302
        %v347 = vmul.f32 %v279, %v302
        %v348 = vmul.f32 %v280, %v302
        %v349 = vmul.f32 %v281, %v302
        %v350 = vmul.f32 %v282, %v302
        %v351 = vmul.f32 %v283, %v302
        %v352 = vmul.f32 %v284, %v302
        %v353 = vmul.f32 %v285, %v302
        %v354 = vmul.f32 %v286, %v302
        %v355 = vmul.f32 %v287, %v302
        %v356 = vmul.f32 %v288, %v302
        %v357 = vmul.f32 %v289, %v302
        %v358 = vmul.f32 %v290, %v302
        %v359 = vmul.f32 %v291, %v302
        %v360 = vmul.f32 %v292, %v302
        %v361 = vmul.f32 %v293, %v302
        %v362 = vmul.f32 %v294, %v302
        %v363 = vmul.f32 %v295, %v302
        %v364 = vmul.f32 %v296, %v302
        %v365 = vmul.f32 %v297, %v302
        %v366 = vmul.f32 %v298, %v302
        %v367 = vmul.f32 %v299, %v302
        %v368 = vld [vmem:[%s2] sm:$0x1]
        %v370 = vperm.slane %v368, 0
        %v372 = vadd.f32 %v304, %v370
        %v373 = vadd.f32 %v305, %v370
        %v374 = vadd.f32 %v306, %v370
        %v375 = vadd.f32 %v307, %v370
        %v376 = vadd.f32 %v308, %v370
        %v377 = vadd.f32 %v309, %v370
        %v378 = vadd.f32 %v310, %v370
        %v379 = vadd.f32 %v311, %v370
        %v380 = vadd.f32 %v312, %v370
        %v381 = vadd.f32 %v313, %v370
        %v382 = vadd.f32 %v314, %v370
        %v383 = vadd.f32 %v315, %v370
        %v384 = vadd.f32 %v316, %v370
        %v385 = vadd.f32 %v317, %v370
        %v386 = vadd.f32 %v318, %v370
        %v387 = vadd.f32 %v319, %v370
        %v388 = vadd.f32 %v320, %v370
        %v389 = vadd.f32 %v321, %v370
        %v390 = vadd.f32 %v322, %v370
        %v391 = vadd.f32 %v323, %v370
        %v392 = vadd.f32 %v324, %v370
        %v393 = vadd.f32 %v325, %v370
        %v394 = vadd.f32 %v326, %v370
        %v395 = vadd.f32 %v327, %v370
        %v396 = vadd.f32 %v328, %v370
        %v397 = vadd.f32 %v329, %v370
        %v398 = vadd.f32 %v330, %v370
        %v399 = vadd.f32 %v331, %v370
        %v400 = vadd.f32 %v332, %v370
        %v401 = vadd.f32 %v333, %v370
        %v402 = vadd.f32 %v334, %v370
        %v403 = vadd.f32 %v335, %v370
        %v404 = vadd.f32 %v336, %v370
        %v405 = vadd.f32 %v337, %v370
        %v406 = vadd.f32 %v338, %v370
        %v407 = vadd.f32 %v339, %v370
        %v408 = vadd.f32 %v340, %v370
        %v409 = vadd.f32 %v341, %v370
        %v410 = vadd.f32 %v342, %v370
        %v411 = vadd.f32 %v343, %v370
        %v412 = vadd.f32 %v344, %v370
        %v413 = vadd.f32 %v345, %v370
        %v414 = vadd.f32 %v346, %v370
        %v415 = vadd.f32 %v347, %v370
        %v416 = vadd.f32 %v348, %v370
        %v417 = vadd.f32 %v349, %v370
        %v418 = vadd.f32 %v350, %v370
        %v419 = vadd.f32 %v351, %v370
        %v420 = vadd.f32 %v352, %v370
        %v421 = vadd.f32 %v353, %v370
        %v422 = vadd.f32 %v354, %v370
        %v423 = vadd.f32 %v355, %v370
        %v424 = vadd.f32 %v356, %v370
        %v425 = vadd.f32 %v357, %v370
        %v426 = vadd.f32 %v358, %v370
        %v427 = vadd.f32 %v359, %v370
        %v428 = vadd.f32 %v360, %v370
        %v429 = vadd.f32 %v361, %v370
        %v430 = vadd.f32 %v362, %v370
        %v431 = vadd.f32 %v363, %v370
        %v432 = vadd.f32 %v364, %v370
        %v433 = vadd.f32 %v365, %v370
        %v434 = vadd.f32 %v366, %v370
        %v435 = vadd.f32 %v367, %v370
        %v436 = vmax.f32 %v372, 0.0
        %v437 = vmax.f32 %v373, 0.0
        %v438 = vmax.f32 %v374, 0.0
        %v439 = vmax.f32 %v375, 0.0
        %v440 = vmax.f32 %v376, 0.0
        %v441 = vmax.f32 %v377, 0.0
        %v442 = vmax.f32 %v378, 0.0
        %v443 = vmax.f32 %v379, 0.0
        %v444 = vmax.f32 %v380, 0.0
        %v445 = vmax.f32 %v381, 0.0
        %v446 = vmax.f32 %v382, 0.0
        %v447 = vmax.f32 %v383, 0.0
        %v448 = vmax.f32 %v384, 0.0
        %v449 = vmax.f32 %v385, 0.0
        %v450 = vmax.f32 %v386, 0.0
        %v451 = vmax.f32 %v387, 0.0
        %v452 = vmax.f32 %v388, 0.0
        %v453 = vmax.f32 %v389, 0.0
        %v454 = vmax.f32 %v390, 0.0
        %v455 = vmax.f32 %v391, 0.0
        %v456 = vmax.f32 %v392, 0.0
        %v457 = vmax.f32 %v393, 0.0
        %v458 = vmax.f32 %v394, 0.0
        %v459 = vmax.f32 %v395, 0.0
        %v460 = vmax.f32 %v396, 0.0
        %v461 = vmax.f32 %v397, 0.0
        %v462 = vmax.f32 %v398, 0.0
        %v463 = vmax.f32 %v399, 0.0
        %v464 = vmax.f32 %v400, 0.0
        %v465 = vmax.f32 %v401, 0.0
        %v466 = vmax.f32 %v402, 0.0
        %v467 = vmax.f32 %v403, 0.0
        %v468 = vmax.f32 %v404, 0.0
        %v469 = vmax.f32 %v405, 0.0
        %v470 = vmax.f32 %v406, 0.0
        %v471 = vmax.f32 %v407, 0.0
        %v472 = vmax.f32 %v408, 0.0
        %v473 = vmax.f32 %v409, 0.0
        %v474 = vmax.f32 %v410, 0.0
        %v475 = vmax.f32 %v411, 0.0
        %v476 = vmax.f32 %v412, 0.0
        %v477 = vmax.f32 %v413, 0.0
        %v478 = vmax.f32 %v414, 0.0
        %v479 = vmax.f32 %v415, 0.0
        %v480 = vmax.f32 %v416, 0.0
        %v481 = vmax.f32 %v417, 0.0
        %v482 = vmax.f32 %v418, 0.0
        %v483 = vmax.f32 %v419, 0.0
        %v484 = vmax.f32 %v420, 0.0
        %v485 = vmax.f32 %v421, 0.0
        %v486 = vmax.f32 %v422, 0.0
        %v487 = vmax.f32 %v423, 0.0
        %v488 = vmax.f32 %v424, 0.0
        %v489 = vmax.f32 %v425, 0.0
        %v490 = vmax.f32 %v426, 0.0
        %v491 = vmax.f32 %v427, 0.0
        %v492 = vmax.f32 %v428, 0.0
        %v493 = vmax.f32 %v429, 0.0
        %v494 = vmax.f32 %v430, 0.0
        %v495 = vmax.f32 %v431, 0.0
        %v496 = vmax.f32 %v432, 0.0
        %v497 = vmax.f32 %v433, 0.0
        %v498 = vmax.f32 %v434, 0.0
        %v499 = vmax.f32 %v435, 0.0
        %500 = vst [vmem:[%s164] sm:$0xff] %v436
        %501 = vst [vmem:[%s164 + $0x8] sm:$0xff] %v437
        %502 = vst [vmem:[%s164 + $0x10] sm:$0xff] %v438
        %503 = vst [vmem:[%s164 + $0x18] sm:$0xff] %v439
        %504 = vst [vmem:[%s164 + $0x20] sm:$0xff] %v440
        %505 = vst [vmem:[%s164 + $0x28] sm:$0xff] %v441
        %506 = vst [vmem:[%s164 + $0x30] sm:$0xff] %v442
        %507 = vst [vmem:[%s164 + $0x38] sm:$0xff] %v443
        %508 = vst [vmem:[%s164 + $0x40] sm:$0xff] %v444
        %509 = vst [vmem:[%s164 + $0x48] sm:$0xff] %v445
        %510 = vst [vmem:[%s164 + $0x50] sm:$0xff] %v446
        %511 = vst [vmem:[%s164 + $0x58] sm:$0xff] %v447
        %512 = vst [vmem:[%s164 + $0x60] sm:$0xff] %v448
        %513 = vst [vmem:[%s164 + $0x68] sm:$0xff] %v449
        %514 = vst [vmem:[%s164 + $0x70] sm:$0xff] %v450
        %515 = vst [vmem:[%s164 + $0x78] sm:$0xff] %v451
        %516 = vst [vmem:[%s164 + $0x80] sm:$0xff] %v452
        %517 = vst [vmem:[%s164 + $0x88] sm:$0xff] %v453
        %518 = vst [vmem:[%s164 + $0x90] sm:$0xff] %v454
        %519 = vst [vmem:[%s164 + $0x98] sm:$0xff] %v455
        %520 = vst [vmem:[%s164 + $0xa0] sm:$0xff] %v456
        %521 = vst [vmem:[%s164 + $0xa8] sm:$0xff] %v457
        %522 = vst [vmem:[%s164 + $0xb0] sm:$0xff] %v458
        %523 = vst [vmem:[%s164 + $0xb8] sm:$0xff] %v459
        %524 = vst [vmem:[%s164 + $0xc0] sm:$0xff] %v460
        %525 = vst [vmem:[%s164 + $0xc8] sm:$0xff] %v461
        %526 = vst [vmem:[%s164 + $0xd0] sm:$0xff] %v462
        %527 = vst [vmem:[%s164 + $0xd8] sm:$0xff] %v463
        %528 = vst [vmem:[%s164 + $0xe0] sm:$0xff] %v464
        %529 = vst [vmem:[%s164 + $0xe8] sm:$0xff] %v465
        %530 = vst [vmem:[%s164 + $0xf0] sm:$0xff] %v466
        %531 = vst [vmem:[%s164 + $0xf8] sm:$0xff] %v467
        %532 = vst [vmem:[%s164 + $0x100] sm:$0xff] %v468
        %533 = vst [vmem:[%s164 + $0x108] sm:$0xff] %v469
        %534 = vst [vmem:[%s164 + $0x110] sm:$0xff] %v470
        %535 = vst [vmem:[%s164 + $0x118] sm:$0xff] %v471
        %536 = vst [vmem:[%s164 + $0x120] sm:$0xff] %v472
        %537 = vst [vmem:[%s164 + $0x128] sm:$0xff] %v473
        %538 = vst [vmem:[%s164 + $0x130] sm:$0xff] %v474
        %539 = vst [vmem:[%s164 + $0x138] sm:$0xff] %v475
        %540 = vst [vmem:[%s164 + $0x140] sm:$0xff] %v476
        %541 = vst [vmem:[%s164 + $0x148] sm:$0xff] %v477
        %542 = vst [vmem:[%s164 + $0x150] sm:$0xff] %v478
        %543 = vst [vmem:[%s164 + $0x158] sm:$0xff] %v479
        %544 = vst [vmem:[%s164 + $0x160] sm:$0xff] %v480
        %545 = vst [vmem:[%s164 + $0x168] sm:$0xff] %v481
        %546 = vst [vmem:[%s164 + $0x170] sm:$0xff] %v482
        %547 = vst [vmem:[%s164 + $0x178] sm:$0xff] %v483
        %548 = vst [vmem:[%s164 + $0x180] sm:$0xff] %v484
        %549 = vst [vmem:[%s164 + $0x188] sm:$0xff] %v485
        %550 = vst [vmem:[%s164 + $0x190] sm:$0xff] %v486
        %551 = vst [vmem:[%s164 + $0x198] sm:$0xff] %v487
        %552 = vst [vmem:[%s164 + $0x1a0] sm:$0xff] %v488
        %553 = vst [vmem:[%s164 + $0x1a8] sm:$0xff] %v489
        %554 = vst [vmem:[%s164 + $0x1b0] sm:$0xff] %v490
        %555 = vst [vmem:[%s164 + $0x1b8] sm:$0xff] %v491
        %556 = vst [vmem:[%s164 + $0x1c0] sm:$0xff] %v492
        %557 = vst [vmem:[%s164 + $0x1c8] sm:$0xff] %v493
        %558 = vst [vmem:[%s164 + $0x1d0] sm:$0xff] %v494
        %559 = vst [vmem:[%s164 + $0x1d8] sm:$0xff] %v495
        %560 = vst [vmem:[%s164 + $0x1e0] sm:$0xff] %v496
        %561 = vst [vmem:[%s164 + $0x1e8] sm:$0xff] %v497
        %562 = vst [vmem:[%s164 + $0x1f0] sm:$0xff] %v498
        %563 = vst [vmem:[%s164 + $0x1f8] sm:$0xff] %v499
        %s564 = sand.u32 %s93, 1
        %s565 = scalar_lea.sflag [#allocation3], %s564
        %s566 = sand.u32 %s93, 1
        %s567 = smul.addr %s566, 512
        %s568 = scalar_lea.vmem [#allocation2], %s567
        // Predicated region
        $region33: #{basic_conv_forward.3} parent=31 // pred_check
          %p569 = pneg %p103
        $region34: #{basic_conv_forward.3} parent=31 // pred_check_branch
          %571 = sbr.rel (%p569) target = $region36
        $region35: #{basic_conv_forward.3} parent=31 // pred_region
          %s572 = smul.u32 64, %s17
          %574 = vsyncadd %s565, 0
          %s575 = smul.addr %s572, 8
          %s576 = scalar_lea.hbm %s3, %s575
          %s577 = sshll.u32 %s568, 4
          %s578 = int_to_ptr.vmem [resolvable:$true] %s577
          %s579 = sshll.u32 %s576, 4
          %s580 = int_to_ptr.hbm [resolvable:$true] %s579
          %585 = dma.vmem_to_hbm [thread:$0]  %s578, 8192, %s580, %s565, 128, 128, 8
        $region36: #{basic_conv_forward.3} parent=31 // pred_fallthru
          _
      $region32: #{basic_conv_forward.3} parent=5 // pred_fallthru
        _
      %p586 = scmp.le.s32.totalorder 2, %s12
      // Predicated region
      $region37: #{basic_conv_forward.3} parent=5 // pred_check
        %p587 = pneg %p586
      $region38: #{basic_conv_forward.3} parent=5 // pred_check_branch
        %589 = sbr.rel (%p587) target = $region40
      $region39: #{basic_conv_forward.3} parent=5 // pred_region
        %s590 = ssub.s32 %s12, 2
        // Predicated region
        $region41: #{basic_conv_forward.3} parent=39 // pred_check
          %p591 = pneg %p109
        $region42: #{basic_conv_forward.3} parent=39 // pred_check_branch
          %593 = sbr.rel (%p591) target = $region44
        $region43: #{basic_conv_forward.3} parent=39 // pred_region
          %s594 = sand.u32 %s94, 1
          %s595 = scalar_lea.sflag [#allocation3], %s594
          %s596 = sand.u32 %s94, 1
          %s597 = smul.addr %s596, 512
          %s598 = scalar_lea.vmem [#allocation2], %s597
          %600 = dma.done %s595, 8192
        $region44: #{basic_conv_forward.3} parent=39 // pred_fallthru
          _
      $region40: #{basic_conv_forward.3} parent=5 // pred_fallthru
        _
    $region6: #{basic_conv_forward.3} parent=1 // loop_footer
      %s16 = sadd.s32 1, %s12
    $region7: #{basic_conv_forward.3} parent=1 // loop_footer_branch
      %11 = sbr.rel target = $region3
    $region8: #{basic_conv_forward.3} parent=1 // loop_exit
      _
    %601 = vsyncpa [#allocation3], 1
    %s602 = scalar_lea.sflag [#allocation3], 1
    %603 = vsyncpa %s602, 1

// kernel: basic_conv_forward.2
$region0: #{basic_conv_forward.2}
  #allocation0 [shape = 'u32[]', space=smem, size = 0x4, offset = 0x4, fixed_abs, tag = 'smem constant byte address 0x4 - core index']
  #allocation1 [shape = 'u32[72,128]{1,0:T(1,128)}', space=vmem, size = 0x9000, scoped, tag = 'internal scratch']
  %s0 = inlined_call_operand.vmem [shape: bf16[2,36,36,32], index: 0, kind: input, shape index: {}]
  %s1 = inlined_call_operand.vmem [shape: bf16[288,128], index: 1, kind: input, shape index: {}]
  %s2 = inlined_call_operand.vmem [shape: bf16[2,1024,128], index: 2, kind: output, shape index: {0}]
  %s3 = inlined_call_operand.vmem [shape: f32[2,4,2,128], index: 3, kind: output, shape index: {1}]
  %4 = xla_tuple %s2, %s3
  %s5 = sld [smem:[#allocation0]]
  $region49: #{basic_conv_forward.2} parent=0
    _
  %s7 = ssub.s32 1, %s5
  %s8 = scalar_select 0, %s7, %s5
  loop: start=0, step=1, limit=10
  $region2: #{basic_conv_forward.2} parent=0 // loop_pre_header
    _
  $region3: #{basic_conv_forward.2} parent=0 // loop_header
    %s10 = sphi 0, %s14
    %p11 = scmp.ge.s32.totalorder %s10, 10
    %s17 = sphi 0, %s29
    %s18 = sphi 0, %s25
    %s19 = sphi 0, %s17
    %s20 = sphi 0, %s18
    %s21 = sphi 0, %s19
    %s22 = sphi 0, %s20
    %s32 = sphi 0, %s34
    %s35 = sphi 0, %s32
    %s36 = sphi 0, %s35
    %s52 = sphi 0, %s36
    %s56 = sphi 0, %s56
    %s58 = sphi 0, %s56
    %s59 = sphi 0, %s58
    %s73 = sphi 0, %s59
    %s81 = sphi 0, %s83
    %s84 = sphi 0, %s81
    %s85 = sphi 0, %s84
    %s101 = sphi 0, %s85
    %s109 = sphi 0, %s111
    %s112 = sphi 0, %s109
    %s113 = sphi 0, %s112
    %s129 = sphi 0, %s113
  $region4: #{basic_conv_forward.2} parent=0 // loop_header_branch
    %13 = sbr.rel (%p11) target = $region8
  $region5: #{basic_conv_forward.2} parent=0 // loop_body
    %s15 = ssub.s32 %s10, 1
    %s16 = ssub.s32 %s10, 2
    %s23 = sadd.s32 1, %s18
    %p24 = scmp.ge.s32.totalorder %s23, 4
    %s25 = scalar_select %p24, 0, %s23
    %s26 = sadd.s32 1, %s17
    %s27 = scalar_select %p24, %s26, %s17
    %p28 = scmp.ge.s32.totalorder %s27, 2
    %s29 = scalar_select %p28, 0, %s27
    %s30 = ssub.s32 %s17, %s29
    %p31 = scmp.eq.s32.totalorder %s30, 0
    %s33 = sadd.s32 %s32, 1
    %s34 = scalar_select %p31, %s32, %s33
    %p37 = pneg %p31
    %p38 = scmp.eq.s32.totalorder %s10, 7
    %p39 = por %p37, %p38
    %p40 = scmp.ne.s32.totalorder %s32, %s35
    %p41 = scmp.eq.s32.totalorder %s10, 0
    %p42 = por %p40, %p41
    %p43 = scmp.ne.s32.totalorder %s32, %s35
    %p44 = scmp.eq.s32.totalorder %s15, 7
    %p45 = por %p43, %p44
    %p46 = scmp.ne.s32.totalorder %s35, %s36
    %p47 = scmp.eq.s32.totalorder %s15, 0
    %p48 = por %p46, %p47
    %p49 = scmp.ne.s32.totalorder %s35, %s36
    %p50 = scmp.eq.s32.totalorder %s16, 7
    %p51 = por %p49, %p50
    %p53 = scmp.ne.s32.totalorder %s36, %s52
    %p54 = scmp.eq.s32.totalorder %s16, 0
    %p55 = por %p53, %p54
    %s57 = sadd.s32 %s56, 1
    %p60 = scmp.eq.s32.totalorder %s10, 7
    %p61 = scmp.ne.s32.totalorder %s56, %s58
    %p62 = scmp.eq.s32.totalorder %s10, 0
    %p63 = por %p61, %p62
    %p64 = scmp.ne.s32.totalorder %s56, %s58
    %p65 = scmp.eq.s32.totalorder %s15, 7
    %p66 = por %p64, %p65
    %p67 = scmp.ne.s32.totalorder %s58, %s59
    %p68 = scmp.eq.s32.totalorder %s15, 0
    %p69 = por %p67, %p68
    %p70 = scmp.ne.s32.totalorder %s58, %s59
    %p71 = scmp.eq.s32.totalorder %s16, 7
    %p72 = por %p70, %p71
    %p74 = scmp.ne.s32.totalorder %s59, %s73
    %p75 = scmp.eq.s32.totalorder %s16, 0
    %p76 = por %p74, %p75
    %s77 = ssub.s32 %s17, %s29
    %s78 = ssub.s32 %s18, %s25
    %s79 = sor.u32 %s77, %s78
    %p80 = scmp.eq.s32.totalorder %s79, 0
    %s82 = sadd.s32 %s81, 1
    %s83 = scalar_select %p80, %s81, %s82
    %p86 = pneg %p80
    %p87 = scmp.eq.s32.totalorder %s10, 7
    %p88 = por %p86, %p87
    %p89 = scmp.ne.s32.totalorder %s81, %s84
    %p90 = scmp.eq.s32.totalorder %s10, 0
    %p91 = por %p89, %p90
    %p92 = scmp.ne.s32.totalorder %s81, %s84
    %p93 = scmp.eq.s32.totalorder %s15, 7
    %p94 = por %p92, %p93
    %p95 = scmp.ne.s32.totalorder %s84, %s85
    %p96 = scmp.eq.s32.totalorder %s15, 0
    %p97 = por %p95, %p96
    %p98 = scmp.ne.s32.totalorder %s84, %s85
    %p99 = scmp.eq.s32.totalorder %s16, 7
    %p100 = por %p98, %p99
    %p102 = scmp.ne.s32.totalorder %s85, %s101
    %p103 = scmp.eq.s32.totalorder %s16, 0
    %p104 = por %p102, %p103
    %s105 = ssub.s32 %s17, %s29
    %s106 = ssub.s32 %s18, %s25
    %s107 = sor.u32 %s105, %s106
    %p108 = scmp.eq.s32.totalorder %s107, 0
    %s110 = sadd.s32 %s109, 1
    %s111 = scalar_select %p108, %s109, %s110
    %p114 = pneg %p108
    %p115 = scmp.eq.s32.totalorder %s10, 7
    %p116 = por %p114, %p115
    %p117 = scmp.ne.s32.totalorder %s109, %s112
    %p118 = scmp.eq.s32.totalorder %s10, 0
    %p119 = por %p117, %p118
    %p120 = scmp.ne.s32.totalorder %s109, %s112
    %p121 = scmp.eq.s32.totalorder %s15, 7
    %p122 = por %p120, %p121
    %p123 = scmp.ne.s32.totalorder %s112, %s113
    %p124 = scmp.eq.s32.totalorder %s15, 0
    %p125 = por %p123, %p124
    %p126 = scmp.ne.s32.totalorder %s112, %s113
    %p127 = scmp.eq.s32.totalorder %s16, 7
    %p128 = por %p126, %p127
    %p130 = scmp.ne.s32.totalorder %s113, %s129
    %p131 = scmp.eq.s32.totalorder %s16, 0
    %p132 = por %p130, %p131
    %p133 = scmp.le.s32.totalorder 1, %s10
    %p134 = scmp.lt.s32.totalorder %s10, 9
    %p135 = pnand %p133, %p134
    %p136 = pneg %p135
    // Predicated region
    $region9: #{basic_conv_forward.2} parent=5 // pred_check
      _
    $region10: #{basic_conv_forward.2} parent=5 // pred_check_branch
      %138 = sbr.rel (%p135) target = $region12
    $region11: #{basic_conv_forward.2} parent=5 // pred_region
      %s139 = ssub.s32 %s10, 1
      // Predicated region
      $region13: #{basic_conv_forward.2} parent=11 // pred_check
        %p140 = pneg %p69
      $region14: #{basic_conv_forward.2} parent=11 // pred_check_branch
        %142 = sbr.rel (%p140) target = $region16
      $region15: #{basic_conv_forward.2} parent=11 // pred_region
        _
      $region16: #{basic_conv_forward.2} parent=11 // pred_fallthru
        _
    $region12: #{basic_conv_forward.2} parent=5 // pred_fallthru
      _
    %p143 = scmp.lt.s32.totalorder %s10, 8
    // Predicated region
    $region17: #{basic_conv_forward.2} parent=5 // pred_check
      %p144 = pneg %p143
    $region18: #{basic_conv_forward.2} parent=5 // pred_check_branch
      %146 = sbr.rel (%p144) target = $region20
    $region19: #{basic_conv_forward.2} parent=5 // pred_region
      // Predicated region
      $region21: #{basic_conv_forward.2} parent=19 // pred_check
        %p147 = pneg %p42
      $region22: #{basic_conv_forward.2} parent=19 // pred_check_branch
        %149 = sbr.rel (%p147) target = $region24
      $region23: #{basic_conv_forward.2} parent=19 // pred_region
        %p150 = scmp.lt.s32.totalorder %s17, 1
        %s151 = scalar_select %p150, %s17, 1
        %s152 = smul.addr %s151, 180
        %s153 = smul.addr %s152, 4
        %s154 = scalar_lea.vmem %s0, %s153
      $region24: #{basic_conv_forward.2} parent=19 // pred_fallthru
        _
    $region20: #{basic_conv_forward.2} parent=5 // pred_fallthru
      _
    %p155 = scmp.le.s32.totalorder 1, %s10
    %p156 = scmp.lt.s32.totalorder %s10, 9
    %p157 = pnand %p155, %p156
    %p158 = pneg %p157
    // Predicated region
    $region25: #{basic_conv_forward.2} parent=5 // pred_check
      _
    $region26: #{basic_conv_forward.2} parent=5 // pred_check_branch
      %160 = sbr.rel (%p157) target = $region28
    $region27: #{basic_conv_forward.2} parent=5 // pred_region
      %s161 = ssub.s32 %s10, 1
      %p162 = scmp.lt.s32.totalorder %s19, 1
      %s163 = scalar_select %p162, %s19, 1
      %s164 = smul.addr %s163, 180
      %s165 = smul.addr %s164, 4
      %s166 = scalar_lea.vmem %s0, %s165
      %p167 = pneg %p48
      %p168 = pneg %p45
      %p169 = pneg %p69
      %p170 = pneg %p66
      %p171 = pneg %p97
      %p172 = pneg %p94
      %s173 = smul.u32 32, %s20
      %p174 = scmp.lt.s32.totalorder %s19, 1
      %s175 = scalar_select %p174, %s19, 1
      %p176 = scmp.lt.s32.totalorder %s173, 127
      %s177 = scalar_select %p176, %s173, 127
      %s178 = smul.addr %s175, 128
      %s179 = sadd.s32 %s177, %s178
      %s180 = smul.addr %s179, 4
      %s181 = scalar_lea.vmem %s2, %s180
      %p182 = pneg %p125
      %p183 = pneg %p122
      %p184 = scmp.lt.s32.totalorder %s19, 1
      %s185 = scalar_select %p184, %s19, 1
      %p186 = scmp.lt.s32.totalorder %s20, 3
      %s187 = scalar_select %p186, %s20, 3
      %s188 = smul.addr %s185, 4
      %s189 = sadd.s32 %s187, %s188
      %s190 = smul.addr %s189, 2
      %s191 = scalar_lea.vmem %s3, %s190
      %p192 = scmp.lt.s32.totalorder %s19, 1
      %s193 = scalar_select %p192, %s19, 1
      %s194 = smul.addr %s193, 180
      %s195 = smul.addr %s194, 4
      %s196 = scalar_lea.vmem %s0, %s195
      %s197 = smul.u32 32, %s20
      %p198 = scmp.lt.s32.totalorder %s19, 1
      %s199 = scalar_select %p198, %s19, 1
      %p200 = scmp.lt.s32.totalorder %s197, 127
      %s201 = scalar_select %p200, %s197, 127
      %s202 = smul.addr %s199, 128
      %s203 = sadd.s32 %s201, %s202
      %s204 = smul.addr %s203, 4
      %s205 = scalar_lea.vmem %s2, %s204
      %s206 = smul.u32 32, %s20
      %p207 = scmp.lt.s32.totalorder %s19, 1
      %s208 = scalar_select %p207, %s19, 1
      %p209 = scmp.lt.s32.totalorder %s20, 3
      %s210 = scalar_select %p209, %s20, 3
      %s211 = smul.addr %s208, 4
      %s212 = sadd.s32 %s210, %s211
      %s213 = smul.addr %s212, 2
      %s214 = scalar_lea.vmem %s3, %s213
      %s216 = smul.u32 %s20, 8
      %s217 = smul.u32 %s216, 5
      %s218 = smul.addr %s217, 4
      %s219 = scalar_lea.vmem %s196, %s218
      %v220 = vld [vmem:[%s219] sm:$0xf]
      %v221 = vld [vmem:[%s219 + $0x4] sm:$0xf]
      %v222 = vld [vmem:[%s219 + $0x8] sm:$0xf]
      %v223 = vld [vmem:[%s219 + $0xc] sm:$0xf]
      %v224 = vld [vmem:[%s219 + $0x10] sm:$0x3]
      %v225 = vld [vmem:[%s219 + $0x14] sm:$0xf]
      %v226 = vld [vmem:[%s219 + $0x18] sm:$0xf]
      %v227 = vld [vmem:[%s219 + $0x1c] sm:$0xf]
      %v228 = vld [vmem:[%s219 + $0x20] sm:$0xf]
      %v229 = vld [vmem:[%s219 + $0x24] sm:$0x3]
      %v230 = vld [vmem:[%s219 + $0x28] sm:$0xf]
      %v231 = vld [vmem:[%s219 + $0x2c] sm:$0xf]
      %v232 = vld [vmem:[%s219 + $0x30] sm:$0xf]
      %v233 = vld [vmem:[%s219 + $0x34] sm:$0xf]
      %v234 = vld [vmem:[%s219 + $0x38] sm:$0x3]
      %v235 = vld [vmem:[%s219 + $0x3c] sm:$0xf]
      %v236 = vld [vmem:[%s219 + $0x40] sm:$0xf]
      %v237 = vld [vmem:[%s219 + $0x44] sm:$0xf]
      %v238 = vld [vmem:[%s219 + $0x48] sm:$0xf]
      %v239 = vld [vmem:[%s219 + $0x4c] sm:$0x3]
      %v240 = vld [vmem:[%s219 + $0x50] sm:$0xf]
      %v241 = vld [vmem:[%s219 + $0x54] sm:$0xf]
      %v242 = vld [vmem:[%s219 + $0x58] sm:$0xf]
      %v243 = vld [vmem:[%s219 + $0x5c] sm:$0xf]
      %v244 = vld [vmem:[%s219 + $0x60] sm:$0x3]
      %v245 = vld [vmem:[%s219 + $0x64] sm:$0xf]
      %v246 = vld [vmem:[%s219 + $0x68] sm:$0xf]
      %v247 = vld [vmem:[%s219 + $0x6c] sm:$0xf]
      %v248 = vld [vmem:[%s219 + $0x70] sm:$0xf]
      %v249 = vld [vmem:[%s219 + $0x74] sm:$0x3]
      %v250 = vld [vmem:[%s219 + $0x78] sm:$0xf]
      %v251 = vld [vmem:[%s219 + $0x7c] sm:$0xf]
      %v252 = vld [vmem:[%s219 + $0x80] sm:$0xf]
      %v253 = vld [vmem:[%s219 + $0x84] sm:$0xf]
      %v254 = vld [vmem:[%s219 + $0x88] sm:$0x3]
      %v255 = vld [vmem:[%s219 + $0x8c] sm:$0xf]
      %v256 = vld [vmem:[%s219 + $0x90] sm:$0xf]
      %v257 = vld [vmem:[%s219 + $0x94] sm:$0xf]
      %v258 = vld [vmem:[%s219 + $0x98] sm:$0xf]
      %v259 = vld [vmem:[%s219 + $0x9c] sm:$0x3]
      %s260 = sadd.s32 %s216, 2
      %s261 = smul.u32 %s260, 5
      %s262 = smul.addr %s261, 4
      %s263 = scalar_lea.vmem %s196, %s262
      %v264 = vld [vmem:[%s263] sm:$0xf]
      %v265 = vld [vmem:[%s263 + $0x4] sm:$0xf]
      %v266 = vld [vmem:[%s263 + $0x8] sm:$0xf]
      %v267 = vld [vmem:[%s263 + $0xc] sm:$0xf]
      %v268 = vld [vmem:[%s263 + $0x10] sm:$0x3]
      %v269 = vld [vmem:[%s263 + $0x14] sm:$0xf]
      %v270 = vld [vmem:[%s263 + $0x18] sm:$0xf]
      %v271 = vld [vmem:[%s263 + $0x1c] sm:$0xf]
      %v272 = vld [vmem:[%s263 + $0x20] sm:$0xf]
      %v273 = vld [vmem:[%s263 + $0x24] sm:$0x3]
      %v274 = vld [vmem:[%s263 + $0x28] sm:$0xf]
      %v275 = vld [vmem:[%s263 + $0x2c] sm:$0xf]
      %v276 = vld [vmem:[%s263 + $0x30] sm:$0xf]
      %v277 = vld [vmem:[%s263 + $0x34] sm:$0xf]
      %v278 = vld [vmem:[%s263 + $0x38] sm:$0x3]
      %v279 = vld [vmem:[%s263 + $0x3c] sm:$0xf]
      %v280 = vld [vmem:[%s263 + $0x40] sm:$0xf]
      %v281 = vld [vmem:[%s263 + $0x44] sm:$0xf]
      %v282 = vld [vmem:[%s263 + $0x48] sm:$0xf]
      %v283 = vld [vmem:[%s263 + $0x4c] sm:$0x3]
      %v284 = vld [vmem:[%s263 + $0x50] sm:$0xf]
      %v285 = vld [vmem:[%s263 + $0x54] sm:$0xf]
      %v286 = vld [vmem:[%s263 + $0x58] sm:$0xf]
      %v287 = vld [vmem:[%s263 + $0x5c] sm:$0xf]
      %v288 = vld [vmem:[%s263 + $0x60] sm:$0x3]
      %v289 = vld [vmem:[%s263 + $0x64] sm:$0xf]
      %v290 = vld [vmem:[%s263 + $0x68] sm:$0xf]
      %v291 = vld [vmem:[%s263 + $0x6c] sm:$0xf]
      %v292 = vld [vmem:[%s263 + $0x70] sm:$0xf]
      %v293 = vld [vmem:[%s263 + $0x74] sm:$0x3]
      %v294 = vld [vmem:[%s263 + $0x78] sm:$0xf]
      %v295 = vld [vmem:[%s263 + $0x7c] sm:$0xf]
      %v296 = vld [vmem:[%s263 + $0x80] sm:$0xf]
      %v297 = vld [vmem:[%s263 + $0x84] sm:$0xf]
      %v298 = vld [vmem:[%s263 + $0x88] sm:$0x3]
      %v299 = vld [vmem:[%s263 + $0x8c] sm:$0xf]
      %v300 = vld [vmem:[%s263 + $0x90] sm:$0xf]
      %v301 = vld [vmem:[%s263 + $0x94] sm:$0xf]
      %v302 = vld [vmem:[%s263 + $0x98] sm:$0xf]
      %v303 = vld [vmem:[%s263 + $0x9c] sm:$0x3]
      %s304 = sadd.s32 %s216, 4
      %s305 = smul.u32 %s304, 5
      %s306 = smul.addr %s305, 4
      %s307 = scalar_lea.vmem %s196, %s306
      %v308 = vld [vmem:[%s307] sm:$0xf]
      %v309 = vld [vmem:[%s307 + $0x4] sm:$0xf]
      %v310 = vld [vmem:[%s307 + $0x8] sm:$0xf]
      %v311 = vld [vmem:[%s307 + $0xc] sm:$0xf]
      %v312 = vld [vmem:[%s307 + $0x10] sm:$0x3]
      %v313 = vld [vmem:[%s307 + $0x14] sm:$0xf]
      %v314 = vld [vmem:[%s307 + $0x18] sm:$0xf]
      %v315 = vld [vmem:[%s307 + $0x1c] sm:$0xf]
      %v316 = vld [vmem:[%s307 + $0x20] sm:$0xf]
      %v317 = vld [vmem:[%s307 + $0x24] sm:$0x3]
      %v318 = vld [vmem:[%s307 + $0x28] sm:$0xf]
      %v319 = vld [vmem:[%s307 + $0x2c] sm:$0xf]
      %v320 = vld [vmem:[%s307 + $0x30] sm:$0xf]
      %v321 = vld [vmem:[%s307 + $0x34] sm:$0xf]
      %v322 = vld [vmem:[%s307 + $0x38] sm:$0x3]
      %v323 = vld [vmem:[%s307 + $0x3c] sm:$0xf]
      %v324 = vld [vmem:[%s307 + $0x40] sm:$0xf]
      %v325 = vld [vmem:[%s307 + $0x44] sm:$0xf]
      %v326 = vld [vmem:[%s307 + $0x48] sm:$0xf]
      %v327 = vld [vmem:[%s307 + $0x4c] sm:$0x3]
      %v328 = vld [vmem:[%s307 + $0x50] sm:$0xf]
      %v329 = vld [vmem:[%s307 + $0x54] sm:$0xf]
      %v330 = vld [vmem:[%s307 + $0x58] sm:$0xf]
      %v331 = vld [vmem:[%s307 + $0x5c] sm:$0xf]
      %v332 = vld [vmem:[%s307 + $0x60] sm:$0x3]
      %v333 = vld [vmem:[%s307 + $0x64] sm:$0xf]
      %v334 = vld [vmem:[%s307 + $0x68] sm:$0xf]
      %v335 = vld [vmem:[%s307 + $0x6c] sm:$0xf]
      %v336 = vld [vmem:[%s307 + $0x70] sm:$0xf]
      %v337 = vld [vmem:[%s307 + $0x74] sm:$0x3]
      %v338 = vld [vmem:[%s307 + $0x78] sm:$0xf]
      %v339 = vld [vmem:[%s307 + $0x7c] sm:$0xf]
      %v340 = vld [vmem:[%s307 + $0x80] sm:$0xf]
      %v341 = vld [vmem:[%s307 + $0x84] sm:$0xf]
      %v342 = vld [vmem:[%s307 + $0x88] sm:$0x3]
      %v343 = vld [vmem:[%s307 + $0x8c] sm:$0xf]
      %v344 = vld [vmem:[%s307 + $0x90] sm:$0xf]
      %v345 = vld [vmem:[%s307 + $0x94] sm:$0xf]
      %v346 = vld [vmem:[%s307 + $0x98] sm:$0xf]
      %v347 = vld [vmem:[%s307 + $0x9c] sm:$0x3]
      %v380 = vunpack.c.l.b16 %v220
      %v381 = vunpack.c.l.b16 %v221
      %v382 = vunpack.c.l.b16 %v222
      %v383 = vunpack.c.l.b16 %v223
      %v384 = vunpack.c.l.b16 %v225
      %v385 = vunpack.c.l.b16 %v226
      %v386 = vunpack.c.l.b16 %v227
      %v387 = vunpack.c.l.b16 %v228
      %v388 = vunpack.c.l.b16 %v230
      %v389 = vunpack.c.l.b16 %v231
      %v390 = vunpack.c.l.b16 %v232
      %v391 = vunpack.c.l.b16 %v233
      %v392 = vunpack.c.l.b16 %v235
      %v393 = vunpack.c.l.b16 %v236
      %v394 = vunpack.c.l.b16 %v237
      %v395 = vunpack.c.l.b16 %v238
      %v396 = vunpack.c.l.b16 %v240
      %v397 = vunpack.c.l.b16 %v241
      %v398 = vunpack.c.l.b16 %v242
      %v399 = vunpack.c.l.b16 %v243
      %v400 = vunpack.c.l.b16 %v245
      %v401 = vunpack.c.l.b16 %v246
      %v402 = vunpack.c.l.b16 %v247
      %v403 = vunpack.c.l.b16 %v248
      %v404 = vunpack.c.l.b16 %v250
      %v405 = vunpack.c.l.b16 %v251
      %v406 = vunpack.c.l.b16 %v252
      %v407 = vunpack.c.l.b16 %v253
      %v408 = vunpack.c.l.b16 %v255
      %v409 = vunpack.c.l.b16 %v256
      %v410 = vunpack.c.l.b16 %v257
      %v411 = vunpack.c.l.b16 %v258
      %v412 = vpack.c.b16 %v381, %v380
      %v413 = vpack.c.b16 %v383, %v382
      %v414 = vpack.c.b16 %v385, %v384
      %v415 = vpack.c.b16 %v387, %v386
      %v416 = vpack.c.b16 %v389, %v388
      %v417 = vpack.c.b16 %v391, %v390
      %v418 = vpack.c.b16 %v393, %v392
      %v419 = vpack.c.b16 %v395, %v394
      %v420 = vpack.c.b16 %v397, %v396
      %v421 = vpack.c.b16 %v399, %v398
      %v422 = vpack.c.b16 %v401, %v400
      %v423 = vpack.c.b16 %v403, %v402
      %v424 = vpack.c.b16 %v405, %v404
      %v425 = vpack.c.b16 %v407, %v406
      %v426 = vpack.c.b16 %v409, %v408
      %v427 = vpack.c.b16 %v411, %v410
      %v436 = vunpack.c.l.b16 %v224
      %v437 = vunpack.c.l.b16 %v229
      %v438 = vunpack.c.l.b16 %v234
      %v439 = vunpack.c.l.b16 %v239
      %v440 = vunpack.c.l.b16 %v244
      %v441 = vunpack.c.l.b16 %v249
      %v442 = vunpack.c.l.b16 %v254
      %v443 = vunpack.c.l.b16 %v259
      %v444 = vpack.c.b16 %v436, %v436
      %v445 = vpack.c.b16 %v437, %v437
      %v446 = vpack.c.b16 %v438, %v438
      %v447 = vpack.c.b16 %v439, %v439
      %v448 = vpack.c.b16 %v440, %v440
      %v449 = vpack.c.b16 %v441, %v441
      %v450 = vpack.c.b16 %v442, %v442
      %v451 = vpack.c.b16 %v443, %v443
      %vm452 = vcmask 1046528
      %v453 = vrot.slane %v412, 1
      %v454 = vrot.slane %v413, 1
      %v455 = vsel %vm452, %v453, %v454
      %v456 = vrot.slane %v444, 1
      %v457 = vsel %vm452, %v454, %v456
      %v458 = vrot.slane %v414, 1
      %v459 = vrot.slane %v415, 1
      %v460 = vsel %vm452, %v458, %v459
      %v461 = vrot.slane %v445, 1
      %v462 = vsel %vm452, %v459, %v461
      %v463 = vrot.slane %v416, 1
      %v464 = vrot.slane %v417, 1
      %v465 = vsel %vm452, %v463, %v464
      %v466 = vrot.slane %v446, 1
      %v467 = vsel %vm452, %v464, %v466
      %v468 = vrot.slane %v418, 1
      %v469 = vrot.slane %v419, 1
      %v470 = vsel %vm452, %v468, %v469
      %v471 = vrot.slane %v447, 1
      %v472 = vsel %vm452, %v469, %v471
      %v473 = vrot.slane %v420, 1
      %v474 = vrot.slane %v421, 1
      %v475 = vsel %vm452, %v473, %v474
      %v476 = vrot.slane %v448, 1
      %v477 = vsel %vm452, %v474, %v476
      %v478 = vrot.slane %v422, 1
      %v479 = vrot.slane %v423, 1
      %v480 = vsel %vm452, %v478, %v479
      %v481 = vrot.slane %v449, 1
      %v482 = vsel %vm452, %v479, %v481
      %v483 = vrot.slane %v424, 1
      %v484 = vrot.slane %v425, 1
      %v485 = vsel %vm452, %v483, %v484
      %v486 = vrot.slane %v450, 1
      %v487 = vsel %vm452, %v484, %v486
      %v488 = vrot.slane %v426, 1
      %v489 = vrot.slane %v427, 1
      %v490 = vsel %vm452, %v488, %v489
      %v491 = vrot.slane %v451, 1
      %v492 = vsel %vm452, %v489, %v491
      %493 = vrot.lane.b32.xlu0 %v455, 32
      %v494 = vpop.permute.xlu0 %493
      %495 = vrot.lane.b32.xlu0 %v457, 32
      %v496 = vpop.permute.xlu0 %495
      %497 = vrot.lane.b32.xlu0 %v460, 32
      %v498 = vpop.permute.xlu0 %497
      %499 = vrot.lane.b32.xlu0 %v462, 32
      %v500 = vpop.permute.xlu0 %499
      %501 = vrot.lane.b32.xlu0 %v465, 32
      %v502 = vpop.permute.xlu0 %501
      %503 = vrot.lane.b32.xlu0 %v467, 32
      %v504 = vpop.permute.xlu0 %503
      %505 = vrot.lane.b32.xlu0 %v470, 32
      %v506 = vpop.permute.xlu0 %505
      %507 = vrot.lane.b32.xlu0 %v472, 32
      %v508 = vpop.permute.xlu0 %507
      %509 = vrot.lane.b32.xlu0 %v475, 32
      %v510 = vpop.permute.xlu0 %509
      %511 = vrot.lane.b32.xlu0 %v477, 32
      %v512 = vpop.permute.xlu0 %511
      %513 = vrot.lane.b32.xlu0 %v480, 32
      %v514 = vpop.permute.xlu0 %513
      %515 = vrot.lane.b32.xlu0 %v482, 32
      %v516 = vpop.permute.xlu0 %515
      %517 = vrot.lane.b32.xlu0 %v485, 32
      %v518 = vpop.permute.xlu0 %517
      %519 = vrot.lane.b32.xlu0 %v487, 32
      %v520 = vpop.permute.xlu0 %519
      %521 = vrot.lane.b32.xlu0 %v490, 32
      %v522 = vpop.permute.xlu0 %521
      %523 = vrot.lane.b32.xlu0 %v492, 32
      %v524 = vpop.permute.xlu0 %523
      %vm525 = vcmask 1045504
      %v526 = vrot.slane %v412, 2
      %v527 = vrot.slane %v413, 2
      %v528 = vsel %vm525, %v526, %v527
      %v529 = vrot.slane %v444, 2
      %v530 = vsel %vm525, %v527, %v529
      %v531 = vrot.slane %v414, 2
      %v532 = vrot.slane %v415, 2
      %v533 = vsel %vm525, %v531, %v532
      %v534 = vrot.slane %v445, 2
      %v535 = vsel %vm525, %v532, %v534
      %v536 = vrot.slane %v416, 2
      %v537 = vrot.slane %v417, 2
      %v538 = vsel %vm525, %v536, %v537
      %v539 = vrot.slane %v446, 2
      %v540 = vsel %vm525, %v537, %v539
      %v541 = vrot.slane %v418, 2
      %v542 = vrot.slane %v419, 2
      %v543 = vsel %vm525, %v541, %v542
      %v544 = vrot.slane %v447, 2
      %v545 = vsel %vm525, %v542, %v544
      %v546 = vrot.slane %v420, 2
      %v547 = vrot.slane %v421, 2
      %v548 = vsel %vm525, %v546, %v547
      %v549 = vrot.slane %v448, 2
      %v550 = vsel %vm525, %v547, %v549
      %v551 = vrot.slane %v422, 2
      %v552 = vrot.slane %v423, 2
      %v553 = vsel %vm525, %v551, %v552
      %v554 = vrot.slane %v449, 2
      %v555 = vsel %vm525, %v552, %v554
      %v556 = vrot.slane %v424, 2
      %v557 = vrot.slane %v425, 2
      %v558 = vsel %vm525, %v556, %v557
      %v559 = vrot.slane %v450, 2
      %v560 = vsel %vm525, %v557, %v559
      %v561 = vrot.slane %v426, 2
      %v562 = vrot.slane %v427, 2
      %v563 = vsel %vm525, %v561, %v562
      %v564 = vrot.slane %v451, 2
      %v565 = vsel %vm525, %v562, %v564
      %566 = vrot.lane.b32.xlu0 %v528, 64
      %v567 = vpop.permute.xlu0 %566
      %568 = vrot.lane.b32.xlu0 %v530, 64
      %v569 = vpop.permute.xlu0 %568
      %570 = vrot.lane.b32.xlu0 %v533, 64
      %v571 = vpop.permute.xlu0 %570
      %572 = vrot.lane.b32.xlu0 %v535, 64
      %v573 = vpop.permute.xlu0 %572
      %574 = vrot.lane.b32.xlu0 %v538, 64
      %v575 = vpop.permute.xlu0 %574
      %576 = vrot.lane.b32.xlu0 %v540, 64
      %v577 = vpop.permute.xlu0 %576
      %578 = vrot.lane.b32.xlu0 %v543, 64
      %v579 = vpop.permute.xlu0 %578
      %580 = vrot.lane.b32.xlu0 %v545, 64
      %v581 = vpop.permute.xlu0 %580
      %582 = vrot.lane.b32.xlu0 %v548, 64
      %v583 = vpop.permute.xlu0 %582
      %584 = vrot.lane.b32.xlu0 %v550, 64
      %v585 = vpop.permute.xlu0 %584
      %586 = vrot.lane.b32.xlu0 %v553, 64
      %v587 = vpop.permute.xlu0 %586
      %588 = vrot.lane.b32.xlu0 %v555, 64
      %v589 = vpop.permute.xlu0 %588
      %590 = vrot.lane.b32.xlu0 %v558, 64
      %v591 = vpop.permute.xlu0 %590
      %592 = vrot.lane.b32.xlu0 %v560, 64
      %v593 = vpop.permute.xlu0 %592
      %594 = vrot.lane.b32.xlu0 %v563, 64
      %v595 = vpop.permute.xlu0 %594
      %596 = vrot.lane.b32.xlu0 %v565, 64
      %v597 = vpop.permute.xlu0 %596
      %v630 = vunpack.c.l.b16 %v264
      %v631 = vunpack.c.l.b16 %v265
      %v632 = vunpack.c.l.b16 %v266
      %v633 = vunpack.c.l.b16 %v267
      %v634 = vunpack.c.l.b16 %v269
      %v635 = vunpack.c.l.b16 %v270
      %v636 = vunpack.c.l.b16 %v271
      %v637 = vunpack.c.l.b16 %v272
      %v638 = vunpack.c.l.b16 %v274
      %v639 = vunpack.c.l.b16 %v275
      %v640 = vunpack.c.l.b16 %v276
      %v641 = vunpack.c.l.b16 %v277
      %v642 = vunpack.c.l.b16 %v279
      %v643 = vunpack.c.l.b16 %v280
      %v644 = vunpack.c.l.b16 %v281
      %v645 = vunpack.c.l.b16 %v282
      %v646 = vunpack.c.l.b16 %v284
      %v647 = vunpack.c.l.b16 %v285
      %v648 = vunpack.c.l.b16 %v286
      %v649 = vunpack.c.l.b16 %v287
      %v650 = vunpack.c.l.b16 %v289
      %v651 = vunpack.c.l.b16 %v290
      %v652 = vunpack.c.l.b16 %v291
      %v653 = vunpack.c.l.b16 %v292
      %v654 = vunpack.c.l.b16 %v294
      %v655 = vunpack.c.l.b16 %v295
      %v656 = vunpack.c.l.b16 %v296
      %v657 = vunpack.c.l.b16 %v297
      %v658 = vunpack.c.l.b16 %v299
      %v659 = vunpack.c.l.b16 %v300
      %v660 = vunpack.c.l.b16 %v301
      %v661 = vunpack.c.l.b16 %v302
      %v662 = vpack.c.b16 %v631, %v630
      %v663 = vpack.c.b16 %v633, %v632
      %v664 = vpack.c.b16 %v635, %v634
      %v665 = vpack.c.b16 %v637, %v636
      %v666 = vpack.c.b16 %v639, %v638
      %v667 = vpack.c.b16 %v641, %v640
      %v668 = vpack.c.b16 %v643, %v642
      %v669 = vpack.c.b16 %v645, %v644
      %v670 = vpack.c.b16 %v647, %v646
      %v671 = vpack.c.b16 %v649, %v648
      %v672 = vpack.c.b16 %v651, %v650
      %v673 = vpack.c.b16 %v653, %v652
      %v674 = vpack.c.b16 %v655, %v654
      %v675 = vpack.c.b16 %v657, %v656
      %v676 = vpack.c.b16 %v659, %v658
      %v677 = vpack.c.b16 %v661, %v660
      %678 = vrot.lane.b32.xlu0 %v662, 96
      %v679 = vpop.permute.xlu0 %678
      %680 = vrot.lane.b32.xlu0 %v663, 96
      %v681 = vpop.permute.xlu0 %680
      %682 = vrot.lane.b32.xlu0 %v664, 96
      %v683 = vpop.permute.xlu0 %682
      %684 = vrot.lane.b32.xlu0 %v665, 96
      %v685 = vpop.permute.xlu0 %684
      %686 = vrot.lane.b32.xlu0 %v666, 96
      %v687 = vpop.permute.xlu0 %686
      %688 = vrot.lane.b32.xlu0 %v667, 96
      %v689 = vpop.permute.xlu0 %688
      %690 = vrot.lane.b32.xlu0 %v668, 96
      %v691 = vpop.permute.xlu0 %690
      %692 = vrot.lane.b32.xlu0 %v669, 96
      %v693 = vpop.permute.xlu0 %692
      %694 = vrot.lane.b32.xlu0 %v670, 96
      %v695 = vpop.permute.xlu0 %694
      %696 = vrot.lane.b32.xlu0 %v671, 96
      %v697 = vpop.permute.xlu0 %696
      %698 = vrot.lane.b32.xlu0 %v672, 96
      %v699 = vpop.permute.xlu0 %698
      %700 = vrot.lane.b32.xlu0 %v673, 96
      %v701 = vpop.permute.xlu0 %700
      %702 = vrot.lane.b32.xlu0 %v674, 96
      %v703 = vpop.permute.xlu0 %702
      %704 = vrot.lane.b32.xlu0 %v675, 96
      %v705 = vpop.permute.xlu0 %704
      %706 = vrot.lane.b32.xlu0 %v676, 96
      %v707 = vpop.permute.xlu0 %706
      %708 = vrot.lane.b32.xlu0 %v677, 96
      %v709 = vpop.permute.xlu0 %708
      %v718 = vunpack.c.l.b16 %v268
      %v719 = vunpack.c.l.b16 %v273
      %v720 = vunpack.c.l.b16 %v278
      %v721 = vunpack.c.l.b16 %v283
      %v722 = vunpack.c.l.b16 %v288
      %v723 = vunpack.c.l.b16 %v293
      %v724 = vunpack.c.l.b16 %v298
      %v725 = vunpack.c.l.b16 %v303
      %v726 = vpack.c.b16 %v718, %v718
      %v727 = vpack.c.b16 %v719, %v719
      %v728 = vpack.c.b16 %v720, %v720
      %v729 = vpack.c.b16 %v721, %v721
      %v730 = vpack.c.b16 %v722, %v722
      %v731 = vpack.c.b16 %v723, %v723
      %v732 = vpack.c.b16 %v724, %v724
      %v733 = vpack.c.b16 %v725, %v725
      %v734 = vrot.slane %v662, 1
      %v735 = vrot.slane %v663, 1
      %v736 = vsel %vm452, %v734, %v735
      %v737 = vrot.slane %v726, 1
      %v738 = vsel %vm452, %v735, %v737
      %v739 = vrot.slane %v664, 1
      %v740 = vrot.slane %v665, 1
      %v741 = vsel %vm452, %v739, %v740
      %v742 = vrot.slane %v727, 1
      %v743 = vsel %vm452, %v740, %v742
      %v744 = vrot.slane %v666, 1
      %v745 = vrot.slane %v667, 1
      %v746 = vsel %vm452, %v744, %v745
      %v747 = vrot.slane %v728, 1
      %v748 = vsel %vm452, %v745, %v747
      %v749 = vrot.slane %v668, 1
      %v750 = vrot.slane %v669, 1
      %v751 = vsel %vm452, %v749, %v750
      %v752 = vrot.slane %v729, 1
      %v753 = vsel %vm452, %v750, %v752
      %v754 = vrot.slane %v670, 1
      %v755 = vrot.slane %v671, 1
      %v756 = vsel %vm452, %v754, %v755
      %v757 = vrot.slane %v730, 1
      %v758 = vsel %vm452, %v755, %v757
      %v759 = vrot.slane %v672, 1
      %v760 = vrot.slane %v673, 1
      %v761 = vsel %vm452, %v759, %v760
      %v762 = vrot.slane %v731, 1
      %v763 = vsel %vm452, %v760, %v762
      %v764 = vrot.slane %v674, 1
      %v765 = vrot.slane %v675, 1
      %v766 = vsel %vm452, %v764, %v765
      %v767 = vrot.slane %v732, 1
      %v768 = vsel %vm452, %v765, %v767
      %v769 = vrot.slane %v676, 1
      %v770 = vrot.slane %v677, 1
      %v771 = vsel %vm452, %v769, %v770
      %v772 = vrot.slane %v733, 1
      %v773 = vsel %vm452, %v770, %v772
      %v774 = vrot.slane %v662, 2
      %v775 = vrot.slane %v663, 2
      %v776 = vsel %vm525, %v774, %v775
      %v777 = vrot.slane %v726, 2
      %v778 = vsel %vm525, %v775, %v777
      %v779 = vrot.slane %v664, 2
      %v780 = vrot.slane %v665, 2
      %v781 = vsel %vm525, %v779, %v780
      %v782 = vrot.slane %v727, 2
      %v783 = vsel %vm525, %v780, %v782
      %v784 = vrot.slane %v666, 2
      %v785 = vrot.slane %v667, 2
      %v786 = vsel %vm525, %v784, %v785
      %v787 = vrot.slane %v728, 2
      %v788 = vsel %vm525, %v785, %v787
      %v789 = vrot.slane %v668, 2
      %v790 = vrot.slane %v669, 2
      %v791 = vsel %vm525, %v789, %v790
      %v792 = vrot.slane %v729, 2
      %v793 = vsel %vm525, %v790, %v792
      %v794 = vrot.slane %v670, 2
      %v795 = vrot.slane %v671, 2
      %v796 = vsel %vm525, %v794, %v795
      %v797 = vrot.slane %v730, 2
      %v798 = vsel %vm525, %v795, %v797
      %v799 = vrot.slane %v672, 2
      %v800 = vrot.slane %v673, 2
      %v801 = vsel %vm525, %v799, %v800
      %v802 = vrot.slane %v731, 2
      %v803 = vsel %vm525, %v800, %v802
      %v804 = vrot.slane %v674, 2
      %v805 = vrot.slane %v675, 2
      %v806 = vsel %vm525, %v804, %v805
      %v807 = vrot.slane %v732, 2
      %v808 = vsel %vm525, %v805, %v807
      %v809 = vrot.slane %v676, 2
      %v810 = vrot.slane %v677, 2
      %v811 = vsel %vm525, %v809, %v810
      %v812 = vrot.slane %v733, 2
      %v813 = vsel %vm525, %v810, %v812
      %814 = vrot.lane.b32.xlu0 %v776, 32
      %v815 = vpop.permute.xlu0 %814
      %816 = vrot.lane.b32.xlu0 %v778, 32
      %v817 = vpop.permute.xlu0 %816
      %818 = vrot.lane.b32.xlu0 %v781, 32
      %v819 = vpop.permute.xlu0 %818
      %820 = vrot.lane.b32.xlu0 %v783, 32
      %v821 = vpop.permute.xlu0 %820
      %822 = vrot.lane.b32.xlu0 %v786, 32
      %v823 = vpop.permute.xlu0 %822
      %824 = vrot.lane.b32.xlu0 %v788, 32
      %v825 = vpop.permute.xlu0 %824
      %826 = vrot.lane.b32.xlu0 %v791, 32
      %v827 = vpop.permute.xlu0 %826
      %828 = vrot.lane.b32.xlu0 %v793, 32
      %v829 = vpop.permute.xlu0 %828
      %830 = vrot.lane.b32.xlu0 %v796, 32
      %v831 = vpop.permute.xlu0 %830
      %832 = vrot.lane.b32.xlu0 %v798, 32
      %v833 = vpop.permute.xlu0 %832
      %834 = vrot.lane.b32.xlu0 %v801, 32
      %v835 = vpop.permute.xlu0 %834
      %836 = vrot.lane.b32.xlu0 %v803, 32
      %v837 = vpop.permute.xlu0 %836
      %838 = vrot.lane.b32.xlu0 %v806, 32
      %v839 = vpop.permute.xlu0 %838
      %840 = vrot.lane.b32.xlu0 %v808, 32
      %v841 = vpop.permute.xlu0 %840
      %842 = vrot.lane.b32.xlu0 %v811, 32
      %v843 = vpop.permute.xlu0 %842
      %844 = vrot.lane.b32.xlu0 %v813, 32
      %v845 = vpop.permute.xlu0 %844
      %v878 = vunpack.c.l.b16 %v308
      %v879 = vunpack.c.l.b16 %v309
      %v880 = vunpack.c.l.b16 %v310
      %v881 = vunpack.c.l.b16 %v311
      %v882 = vunpack.c.l.b16 %v313
      %v883 = vunpack.c.l.b16 %v314
      %v884 = vunpack.c.l.b16 %v315
      %v885 = vunpack.c.l.b16 %v316
      %v886 = vunpack.c.l.b16 %v318
      %v887 = vunpack.c.l.b16 %v319
      %v888 = vunpack.c.l.b16 %v320
      %v889 = vunpack.c.l.b16 %v321
      %v890 = vunpack.c.l.b16 %v323
      %v891 = vunpack.c.l.b16 %v324
      %v892 = vunpack.c.l.b16 %v325
      %v893 = vunpack.c.l.b16 %v326
      %v894 = vunpack.c.l.b16 %v328
      %v895 = vunpack.c.l.b16 %v329
      %v896 = vunpack.c.l.b16 %v330
      %v897 = vunpack.c.l.b16 %v331
      %v898 = vunpack.c.l.b16 %v333
      %v899 = vunpack.c.l.b16 %v334
      %v900 = vunpack.c.l.b16 %v335
      %v901 = vunpack.c.l.b16 %v336
      %v902 = vunpack.c.l.b16 %v338
      %v903 = vunpack.c.l.b16 %v339
      %v904 = vunpack.c.l.b16 %v340
      %v905 = vunpack.c.l.b16 %v341
      %v906 = vunpack.c.l.b16 %v343
      %v907 = vunpack.c.l.b16 %v344
      %v908 = vunpack.c.l.b16 %v345
      %v909 = vunpack.c.l.b16 %v346
      %v910 = vpack.c.b16 %v879, %v878
      %v911 = vpack.c.b16 %v881, %v880
      %v912 = vpack.c.b16 %v883, %v882
      %v913 = vpack.c.b16 %v885, %v884
      %v914 = vpack.c.b16 %v887, %v886
      %v915 = vpack.c.b16 %v889, %v888
      %v916 = vpack.c.b16 %v891, %v890
      %v917 = vpack.c.b16 %v893, %v892
      %v918 = vpack.c.b16 %v895, %v894
      %v919 = vpack.c.b16 %v897, %v896
      %v920 = vpack.c.b16 %v899, %v898
      %v921 = vpack.c.b16 %v901, %v900
      %v922 = vpack.c.b16 %v903, %v902
      %v923 = vpack.c.b16 %v905, %v904
      %v924 = vpack.c.b16 %v907, %v906
      %v925 = vpack.c.b16 %v909, %v908
      %926 = vrot.lane.b32.xlu0 %v910, 64
      %v927 = vpop.permute.xlu0 %926
      %928 = vrot.lane.b32.xlu0 %v911, 64
      %v929 = vpop.permute.xlu0 %928
      %930 = vrot.lane.b32.xlu0 %v912, 64
      %v931 = vpop.permute.xlu0 %930
      %932 = vrot.lane.b32.xlu0 %v913, 64
      %v933 = vpop.permute.xlu0 %932
      %934 = vrot.lane.b32.xlu0 %v914, 64
      %v935 = vpop.permute.xlu0 %934
      %936 = vrot.lane.b32.xlu0 %v915, 64
      %v937 = vpop.permute.xlu0 %936
      %938 = vrot.lane.b32.xlu0 %v916, 64
      %v939 = vpop.permute.xlu0 %938
      %940 = vrot.lane.b32.xlu0 %v917, 64
      %v941 = vpop.permute.xlu0 %940
      %942 = vrot.lane.b32.xlu0 %v918, 64
      %v943 = vpop.permute.xlu0 %942
      %944 = vrot.lane.b32.xlu0 %v919, 64
      %v945 = vpop.permute.xlu0 %944
      %946 = vrot.lane.b32.xlu0 %v920, 64
      %v947 = vpop.permute.xlu0 %946
      %948 = vrot.lane.b32.xlu0 %v921, 64
      %v949 = vpop.permute.xlu0 %948
      %950 = vrot.lane.b32.xlu0 %v922, 64
      %v951 = vpop.permute.xlu0 %950
      %952 = vrot.lane.b32.xlu0 %v923, 64
      %v953 = vpop.permute.xlu0 %952
      %954 = vrot.lane.b32.xlu0 %v924, 64
      %v955 = vpop.permute.xlu0 %954
      %956 = vrot.lane.b32.xlu0 %v925, 64
      %v957 = vpop.permute.xlu0 %956
      %v966 = vunpack.c.l.b16 %v312
      %v967 = vunpack.c.l.b16 %v317
      %v968 = vunpack.c.l.b16 %v322
      %v969 = vunpack.c.l.b16 %v327
      %v970 = vunpack.c.l.b16 %v332
      %v971 = vunpack.c.l.b16 %v337
      %v972 = vunpack.c.l.b16 %v342
      %v973 = vunpack.c.l.b16 %v347
      %v974 = vpack.c.b16 %v966, %v966
      %v975 = vpack.c.b16 %v967, %v967
      %v976 = vpack.c.b16 %v968, %v968
      %v977 = vpack.c.b16 %v969, %v969
      %v978 = vpack.c.b16 %v970, %v970
      %v979 = vpack.c.b16 %v971, %v971
      %v980 = vpack.c.b16 %v972, %v972
      %v981 = vpack.c.b16 %v973, %v973
      %v982 = vrot.slane %v910, 1
      %v983 = vrot.slane %v911, 1
      %v984 = vsel %vm452, %v982, %v983
      %v985 = vrot.slane %v974, 1
      %v986 = vsel %vm452, %v983, %v985
      %v987 = vrot.slane %v912, 1
      %v988 = vrot.slane %v913, 1
      %v989 = vsel %vm452, %v987, %v988
      %v990 = vrot.slane %v975, 1
      %v991 = vsel %vm452, %v988, %v990
      %v992 = vrot.slane %v914, 1
      %v993 = vrot.slane %v915, 1
      %v994 = vsel %vm452, %v992, %v993
      %v995 = vrot.slane %v976, 1
      %v996 = vsel %vm452, %v993, %v995
      %v997 = vrot.slane %v916, 1
      %v998 = vrot.slane %v917, 1
      %v999 = vsel %vm452, %v997, %v998
      %v1000 = vrot.slane %v977, 1
      %v1001 = vsel %vm452, %v998, %v1000
      %v1002 = vrot.slane %v918, 1
      %v1003 = vrot.slane %v919, 1
      %v1004 = vsel %vm452, %v1002, %v1003
      %v1005 = vrot.slane %v978, 1
      %v1006 = vsel %vm452, %v1003, %v1005
      %v1007 = vrot.slane %v920, 1
      %v1008 = vrot.slane %v921, 1
      %v1009 = vsel %vm452, %v1007, %v1008
      %v1010 = vrot.slane %v979, 1
      %v1011 = vsel %vm452, %v1008, %v1010
      %v1012 = vrot.slane %v922, 1
      %v1013 = vrot.slane %v923, 1
      %v1014 = vsel %vm452, %v1012, %v1013
      %v1015 = vrot.slane %v980, 1
      %v1016 = vsel %vm452, %v1013, %v1015
      %v1017 = vrot.slane %v924, 1
      %v1018 = vrot.slane %v925, 1
      %v1019 = vsel %vm452, %v1017, %v1018
      %v1020 = vrot.slane %v981, 1
      %v1021 = vsel %vm452, %v1018, %v1020
      %1022 = vrot.lane.b32.xlu0 %v984, 96
      %v1023 = vpop.permute.xlu0 %1022
      %1024 = vrot.lane.b32.xlu0 %v986, 96
      %v1025 = vpop.permute.xlu0 %1024
      %1026 = vrot.lane.b32.xlu0 %v989, 96
      %v1027 = vpop.permute.xlu0 %1026
      %1028 = vrot.lane.b32.xlu0 %v991, 96
      %v1029 = vpop.permute.xlu0 %1028
      %1030 = vrot.lane.b32.xlu0 %v994, 96
      %v1031 = vpop.permute.xlu0 %1030
      %1032 = vrot.lane.b32.xlu0 %v996, 96
      %v1033 = vpop.permute.xlu0 %1032
      %1034 = vrot.lane.b32.xlu0 %v999, 96
      %v1035 = vpop.permute.xlu0 %1034
      %1036 = vrot.lane.b32.xlu0 %v1001, 96
      %v1037 = vpop.permute.xlu0 %1036
      %1038 = vrot.lane.b32.xlu0 %v1004, 96
      %v1039 = vpop.permute.xlu0 %1038
      %1040 = vrot.lane.b32.xlu0 %v1006, 96
      %v1041 = vpop.permute.xlu0 %1040
      %1042 = vrot.lane.b32.xlu0 %v1009, 96
      %v1043 = vpop.permute.xlu0 %1042
      %1044 = vrot.lane.b32.xlu0 %v1011, 96
      %v1045 = vpop.permute.xlu0 %1044
      %1046 = vrot.lane.b32.xlu0 %v1014, 96
      %v1047 = vpop.permute.xlu0 %1046
      %1048 = vrot.lane.b32.xlu0 %v1016, 96
      %v1049 = vpop.permute.xlu0 %1048
      %1050 = vrot.lane.b32.xlu0 %v1019, 96
      %v1051 = vpop.permute.xlu0 %1050
      %1052 = vrot.lane.b32.xlu0 %v1021, 96
      %v1053 = vpop.permute.xlu0 %1052
      %v1054 = vrot.slane %v910, 2
      %v1055 = vrot.slane %v911, 2
      %v1056 = vsel %vm525, %v1054, %v1055
      %v1057 = vrot.slane %v974, 2
      %v1058 = vsel %vm525, %v1055, %v1057
      %v1059 = vrot.slane %v912, 2
      %v1060 = vrot.slane %v913, 2
      %v1061 = vsel %vm525, %v1059, %v1060
      %v1062 = vrot.slane %v975, 2
      %v1063 = vsel %vm525, %v1060, %v1062
      %v1064 = vrot.slane %v914, 2
      %v1065 = vrot.slane %v915, 2
      %v1066 = vsel %vm525, %v1064, %v1065
      %v1067 = vrot.slane %v976, 2
      %v1068 = vsel %vm525, %v1065, %v1067
      %v1069 = vrot.slane %v916, 2
      %v1070 = vrot.slane %v917, 2
      %v1071 = vsel %vm525, %v1069, %v1070
      %v1072 = vrot.slane %v977, 2
      %v1073 = vsel %vm525, %v1070, %v1072
      %v1074 = vrot.slane %v918, 2
      %v1075 = vrot.slane %v919, 2
      %v1076 = vsel %vm525, %v1074, %v1075
      %v1077 = vrot.slane %v978, 2
      %v1078 = vsel %vm525, %v1075, %v1077
      %v1079 = vrot.slane %v920, 2
      %v1080 = vrot.slane %v921, 2
      %v1081 = vsel %vm525, %v1079, %v1080
      %v1082 = vrot.slane %v979, 2
      %v1083 = vsel %vm525, %v1080, %v1082
      %v1084 = vrot.slane %v922, 2
      %v1085 = vrot.slane %v923, 2
      %v1086 = vsel %vm525, %v1084, %v1085
      %v1087 = vrot.slane %v980, 2
      %v1088 = vsel %vm525, %v1085, %v1087
      %v1089 = vrot.slane %v924, 2
      %v1090 = vrot.slane %v925, 2
      %v1091 = vsel %vm525, %v1089, %v1090
      %v1092 = vrot.slane %v981, 2
      %v1093 = vsel %vm525, %v1090, %v1092
      %vm1094 = vcmask 261120
      %v1097 = vsel %vm1094, %v412, %v494
      %v1100 = vsel %vm1094, %v413, %v496
      %v1103 = vsel %vm1094, %v414, %v498
      %v1106 = vsel %vm1094, %v415, %v500
      %v1109 = vsel %vm1094, %v416, %v502
      %v1112 = vsel %vm1094, %v417, %v504
      %v1115 = vsel %vm1094, %v418, %v506
      %v1118 = vsel %vm1094, %v419, %v508
      %v1121 = vsel %vm1094, %v420, %v510
      %v1124 = vsel %vm1094, %v421, %v512
      %v1127 = vsel %vm1094, %v422, %v514
      %v1130 = vsel %vm1094, %v423, %v516
      %v1133 = vsel %vm1094, %v424, %v518
      %v1136 = vsel %vm1094, %v425, %v520
      %v1139 = vsel %vm1094, %v426, %v522
      %v1142 = vsel %vm1094, %v427, %v524
      %vm1143 = vcmask 523264
      %v1145 = vsel %vm1143, %v1097, %v567
      %v1147 = vsel %vm1143, %v1100, %v569
      %v1149 = vsel %vm1143, %v1103, %v571
      %v1151 = vsel %vm1143, %v1106, %v573
      %v1153 = vsel %vm1143, %v1109, %v575
      %v1155 = vsel %vm1143, %v1112, %v577
      %v1157 = vsel %vm1143, %v1115, %v579
      %v1159 = vsel %vm1143, %v1118, %v581
      %v1161 = vsel %vm1143, %v1121, %v583
      %v1163 = vsel %vm1143, %v1124, %v585
      %v1165 = vsel %vm1143, %v1127, %v587
      %v1167 = vsel %vm1143, %v1130, %v589
      %v1169 = vsel %vm1143, %v1133, %v591
      %v1171 = vsel %vm1143, %v1136, %v593
      %v1173 = vsel %vm1143, %v1139, %v595
      %v1175 = vsel %vm1143, %v1142, %v597
      %vm1176 = vcmask 785408
      %v1178 = vsel %vm1176, %v1145, %v679
      %v1181 = vsel %vm1176, %v1147, %v681
      %v1184 = vsel %vm1176, %v1149, %v683
      %v1187 = vsel %vm1176, %v1151, %v685
      %v1190 = vsel %vm1176, %v1153, %v687
      %v1193 = vsel %vm1176, %v1155, %v689
      %v1196 = vsel %vm1176, %v1157, %v691
      %v1199 = vsel %vm1176, %v1159, %v693
      %v1202 = vsel %vm1176, %v1161, %v695
      %v1205 = vsel %vm1176, %v1163, %v697
      %v1208 = vsel %vm1176, %v1165, %v699
      %v1211 = vsel %vm1176, %v1167, %v701
      %v1214 = vsel %vm1176, %v1169, %v703
      %v1217 = vsel %vm1176, %v1171, %v705
      %v1220 = vsel %vm1176, %v1173, %v707
      %v1223 = vsel %vm1176, %v1175, %v709
      %v1227 = vsel %vm1094, %v736, %v815
      %v1230 = vsel %vm1094, %v738, %v817
      %v1233 = vsel %vm1094, %v741, %v819
      %v1236 = vsel %vm1094, %v743, %v821
      %v1239 = vsel %vm1094, %v746, %v823
      %v1242 = vsel %vm1094, %v748, %v825
      %v1245 = vsel %vm1094, %v751, %v827
      %v1248 = vsel %vm1094, %v753, %v829
      %v1251 = vsel %vm1094, %v756, %v831
      %v1254 = vsel %vm1094, %v758, %v833
      %v1257 = vsel %vm1094, %v761, %v835
      %v1260 = vsel %vm1094, %v763, %v837
      %v1263 = vsel %vm1094, %v766, %v839
      %v1266 = vsel %vm1094, %v768, %v841
      %v1269 = vsel %vm1094, %v771, %v843
      %v1272 = vsel %vm1094, %v773, %v845
      %v1274 = vsel %vm1143, %v1227, %v927
      %v1276 = vsel %vm1143, %v1230, %v929
      %v1278 = vsel %vm1143, %v1233, %v931
      %v1280 = vsel %vm1143, %v1236, %v933
      %v1282 = vsel %vm1143, %v1239, %v935
      %v1284 = vsel %vm1143, %v1242, %v937
      %v1286 = vsel %vm1143, %v1245, %v939
      %v1288 = vsel %vm1143, %v1248, %v941
      %v1290 = vsel %vm1143, %v1251, %v943
      %v1292 = vsel %vm1143, %v1254, %v945
      %v1294 = vsel %vm1143, %v1257, %v947
      %v1296 = vsel %vm1143, %v1260, %v949
      %v1298 = vsel %vm1143, %v1263, %v951
      %v1300 = vsel %vm1143, %v1266, %v953
      %v1302 = vsel %vm1143, %v1269, %v955
      %v1304 = vsel %vm1143, %v1272, %v957
      %v1306 = vsel %vm1176, %v1274, %v1023
      %v1309 = vsel %vm1176, %v1276, %v1025
      %v1312 = vsel %vm1176, %v1278, %v1027
      %v1315 = vsel %vm1176, %v1280, %v1029
      %v1318 = vsel %vm1176, %v1282, %v1031
      %v1321 = vsel %vm1176, %v1284, %v1033
      %v1324 = vsel %vm1176, %v1286, %v1035
      %v1327 = vsel %vm1176, %v1288, %v1037
      %v1330 = vsel %vm1176, %v1290, %v1039
      %v1333 = vsel %vm1176, %v1292, %v1041
      %v1336 = vsel %vm1176, %v1294, %v1043
      %v1339 = vsel %vm1176, %v1296, %v1045
      %v1342 = vsel %vm1176, %v1298, %v1047
      %v1345 = vsel %vm1176, %v1300, %v1049
      %v1348 = vsel %vm1176, %v1302, %v1051
      %v1351 = vsel %vm1176, %v1304, %v1053
      %v1353 = vld [vmem:[%s1] sm:$0xf]
      %v1354 = vld [vmem:[%s1 + $0x4] sm:$0xf]
      %v1355 = vld [vmem:[%s1 + $0x8] sm:$0xf]
      %v1356 = vld [vmem:[%s1 + $0xc] sm:$0xf]
      %v1357 = vld [vmem:[%s1 + $0x10] sm:$0xf]
      %v1358 = vld [vmem:[%s1 + $0x14] sm:$0xf]
      %v1359 = vld [vmem:[%s1 + $0x18] sm:$0xf]
      %v1360 = vld [vmem:[%s1 + $0x1c] sm:$0xf]
      %v1361 = vld [vmem:[%s1 + $0x20] sm:$0xf]
      %v1362 = vld [vmem:[%s1 + $0x24] sm:$0xf]
      %v1363 = vld [vmem:[%s1 + $0x28] sm:$0xf]
      %v1364 = vld [vmem:[%s1 + $0x2c] sm:$0xf]
      %v1365 = vld [vmem:[%s1 + $0x30] sm:$0xf]
      %v1366 = vld [vmem:[%s1 + $0x34] sm:$0xf]
      %v1367 = vld [vmem:[%s1 + $0x38] sm:$0xf]
      %v1368 = vld [vmem:[%s1 + $0x3c] sm:$0xf]
      %v1369 = vld [vmem:[%s1 + $0x40] sm:$0xf]
      %v1370 = vld [vmem:[%s1 + $0x44] sm:$0xf]
      %v1371 = vld [vmem:[%s1 + $0x48] sm:$0xf]
      %v1372 = vld [vmem:[%s1 + $0x4c] sm:$0xf]
      %v1373 = vld [vmem:[%s1 + $0x50] sm:$0xf]
      %v1374 = vld [vmem:[%s1 + $0x54] sm:$0xf]
      %v1375 = vld [vmem:[%s1 + $0x58] sm:$0xf]
      %v1376 = vld [vmem:[%s1 + $0x5c] sm:$0xf]
      %v1377 = vld [vmem:[%s1 + $0x60] sm:$0xf]
      %v1378 = vld [vmem:[%s1 + $0x64] sm:$0xf]
      %v1379 = vld [vmem:[%s1 + $0x68] sm:$0xf]
      %v1380 = vld [vmem:[%s1 + $0x6c] sm:$0xf]
      %v1381 = vld [vmem:[%s1 + $0x70] sm:$0xf]
      %v1382 = vld [vmem:[%s1 + $0x74] sm:$0xf]
      %v1383 = vld [vmem:[%s1 + $0x78] sm:$0xf]
      %v1384 = vld [vmem:[%s1 + $0x7c] sm:$0xf]
      %v1385 = vld [vmem:[%s1 + $0x80] sm:$0xf]
      %v1386 = vld [vmem:[%s1 + $0x84] sm:$0xf]
      %v1387 = vld [vmem:[%s1 + $0x88] sm:$0xf]
      %v1388 = vld [vmem:[%s1 + $0x8c] sm:$0xf]
      %v1425 = vunpack.c.l.b16 %v1353
      %v1426 = vunpack.c.l.b16 %v1354
      %v1427 = vunpack.c.l.b16 %v1355
      %v1428 = vunpack.c.l.b16 %v1356
      %v1429 = vunpack.c.l.b16 %v1357
      %v1430 = vunpack.c.l.b16 %v1358
      %v1431 = vunpack.c.l.b16 %v1359
      %v1432 = vunpack.c.l.b16 %v1360
      %v1433 = vunpack.c.l.b16 %v1361
      %v1434 = vunpack.c.l.b16 %v1362
      %v1435 = vunpack.c.l.b16 %v1363
      %v1436 = vunpack.c.l.b16 %v1364
      %v1437 = vunpack.c.l.b16 %v1365
      %v1438 = vunpack.c.l.b16 %v1366
      %v1439 = vunpack.c.l.b16 %v1367
      %v1440 = vunpack.c.l.b16 %v1368
      %v1441 = vunpack.c.l.b16 %v1369
      %v1442 = vunpack.c.l.b16 %v1370
      %v1443 = vunpack.c.l.b16 %v1371
      %v1444 = vunpack.c.l.b16 %v1372
      %v1445 = vunpack.c.l.b16 %v1373
      %v1446 = vunpack.c.l.b16 %v1374
      %v1447 = vunpack.c.l.b16 %v1375
      %v1448 = vunpack.c.l.b16 %v1376
      %v1449 = vunpack.c.l.b16 %v1377
      %v1450 = vunpack.c.l.b16 %v1378
      %v1451 = vunpack.c.l.b16 %v1379
      %v1452 = vunpack.c.l.b16 %v1380
      %v1453 = vunpack.c.l.b16 %v1381
      %v1454 = vunpack.c.l.b16 %v1382
      %v1455 = vunpack.c.l.b16 %v1383
      %v1456 = vunpack.c.l.b16 %v1384
      %v1457 = vunpack.c.l.b16 %v1385
      %v1458 = vunpack.c.l.b16 %v1386
      %v1459 = vunpack.c.l.b16 %v1387
      %v1460 = vunpack.c.l.b16 %v1388
      %v1461 = vpack.c.b16 %v1426, %v1425
      %v1462 = vpack.c.b16 %v1428, %v1427
      %v1463 = vpack.c.b16 %v1430, %v1429
      %v1464 = vpack.c.b16 %v1432, %v1431
      %v1465 = vpack.c.b16 %v1434, %v1433
      %v1466 = vpack.c.b16 %v1436, %v1435
      %v1467 = vpack.c.b16 %v1438, %v1437
      %v1468 = vpack.c.b16 %v1440, %v1439
      %v1469 = vpack.c.b16 %v1442, %v1441
      %v1470 = vpack.c.b16 %v1444, %v1443
      %v1471 = vpack.c.b16 %v1446, %v1445
      %v1472 = vpack.c.b16 %v1448, %v1447
      %v1473 = vpack.c.b16 %v1450, %v1449
      %v1474 = vpack.c.b16 %v1452, %v1451
      %v1475 = vpack.c.b16 %v1454, %v1453
      %v1476 = vpack.c.b16 %v1456, %v1455
      %v1477 = vpack.c.b16 %v1458, %v1457
      %v1478 = vpack.c.b16 %v1460, %v1459
      %v1498 = vsel %vm1094, %v1056, 0
      %v1501 = vsel %vm1094, %v1058, 0
      %v1504 = vsel %vm1094, %v1061, 0
      %v1507 = vsel %vm1094, %v1063, 0
      %v1510 = vsel %vm1094, %v1066, 0
      %v1513 = vsel %vm1094, %v1068, 0
      %v1516 = vsel %vm1094, %v1071, 0
      %v1519 = vsel %vm1094, %v1073, 0
      %v1522 = vsel %vm1094, %v1076, 0
      %v1525 = vsel %vm1094, %v1078, 0
      %v1528 = vsel %vm1094, %v1081, 0
      %v1531 = vsel %vm1094, %v1083, 0
      %v1534 = vsel %vm1094, %v1086, 0
      %v1537 = vsel %vm1094, %v1088, 0
      %v1540 = vsel %vm1094, %v1091, 0
      %v1543 = vsel %vm1094, %v1093, 0
      %1545 = vmatpush.bf16.msra.mxu0 %v1468
      %1546 = vmatpush.bf16.msra.mxu0 %v1467
      %1547 = vmatpush.bf16.msra.mxu0 %v1466
      %1548 = vmatpush.bf16.msra.mxu0 %v1465
      %1549 = vmatpush.bf16.msra.mxu0 %v1464
      %1550 = vmatpush.bf16.msra.mxu0 %v1463
      %1551 = vmatpush.bf16.msra.mxu0 %v1462
      %1552 = vmatpush.bf16.msra.mxu0 %v1461
      %1553 = vmatmul.bf16.gmra.mxu0 %v1178
      %v1554 = vpop.f32.mrf.mxu0
      %v1555 = vadd.f32 0.0, %v1554
      %v1556 = vpop.f32.mrf.mxu0
      %v1557 = vadd.f32 0.0, %v1556
      %1558 = vmatmul.bf16.gmra.mxu0 %v1181
      %v1559 = vpop.f32.mrf.mxu0
      %v1560 = vadd.f32 0.0, %v1559
      %v1561 = vpop.f32.mrf.mxu0
      %v1562 = vadd.f32 0.0, %v1561
      %1563 = vmatmul.bf16.gmra.mxu0 %v1184
      %v1564 = vpop.f32.mrf.mxu0
      %v1565 = vadd.f32 0.0, %v1564
      %v1566 = vpop.f32.mrf.mxu0
      %v1567 = vadd.f32 0.0, %v1566
      %1568 = vmatmul.bf16.gmra.mxu0 %v1187
      %v1569 = vpop.f32.mrf.mxu0
      %v1570 = vadd.f32 0.0, %v1569
      %v1571 = vpop.f32.mrf.mxu0
      %v1572 = vadd.f32 0.0, %v1571
      %1573 = vmatmul.bf16.gmra.mxu0 %v1190
      %v1574 = vpop.f32.mrf.mxu0
      %v1575 = vadd.f32 0.0, %v1574
      %v1576 = vpop.f32.mrf.mxu0
      %v1577 = vadd.f32 0.0, %v1576
      %1578 = vmatmul.bf16.gmra.mxu0 %v1193
      %v1579 = vpop.f32.mrf.mxu0
      %v1580 = vadd.f32 0.0, %v1579
      %v1581 = vpop.f32.mrf.mxu0
      %v1582 = vadd.f32 0.0, %v1581
      %1583 = vmatmul.bf16.gmra.mxu0 %v1196
      %v1584 = vpop.f32.mrf.mxu0
      %v1585 = vadd.f32 0.0, %v1584
      %v1586 = vpop.f32.mrf.mxu0
      %v1587 = vadd.f32 0.0, %v1586
      %1588 = vmatmul.bf16.gmra.mxu0 %v1199
      %v1589 = vpop.f32.mrf.mxu0
      %v1590 = vadd.f32 0.0, %v1589
      %v1591 = vpop.f32.mrf.mxu0
      %v1592 = vadd.f32 0.0, %v1591
      %1593 = vmatmul.bf16.gmra.mxu0 %v1202
      %v1594 = vpop.f32.mrf.mxu0
      %v1595 = vadd.f32 0.0, %v1594
      %v1596 = vpop.f32.mrf.mxu0
      %v1597 = vadd.f32 0.0, %v1596
      %1598 = vmatmul.bf16.gmra.mxu0 %v1205
      %v1599 = vpop.f32.mrf.mxu0
      %v1600 = vadd.f32 0.0, %v1599
      %v1601 = vpop.f32.mrf.mxu0
      %v1602 = vadd.f32 0.0, %v1601
      %1603 = vmatmul.bf16.gmra.mxu0 %v1208
      %v1604 = vpop.f32.mrf.mxu0
      %v1605 = vadd.f32 0.0, %v1604
      %v1606 = vpop.f32.mrf.mxu0
      %v1607 = vadd.f32 0.0, %v1606
      %1608 = vmatmul.bf16.gmra.mxu0 %v1211
      %v1609 = vpop.f32.mrf.mxu0
      %v1610 = vadd.f32 0.0, %v1609
      %v1611 = vpop.f32.mrf.mxu0
      %v1612 = vadd.f32 0.0, %v1611
      %1613 = vmatmul.bf16.gmra.mxu0 %v1214
      %v1614 = vpop.f32.mrf.mxu0
      %v1615 = vadd.f32 0.0, %v1614
      %v1616 = vpop.f32.mrf.mxu0
      %v1617 = vadd.f32 0.0, %v1616
      %1618 = vmatmul.bf16.gmra.mxu0 %v1217
      %v1619 = vpop.f32.mrf.mxu0
      %v1620 = vadd.f32 0.0, %v1619
      %v1621 = vpop.f32.mrf.mxu0
      %v1622 = vadd.f32 0.0, %v1621
      %1623 = vmatmul.bf16.gmra.mxu0 %v1220
      %v1624 = vpop.f32.mrf.mxu0
      %v1625 = vadd.f32 0.0, %v1624
      %v1626 = vpop.f32.mrf.mxu0
      %v1627 = vadd.f32 0.0, %v1626
      %1628 = vmatmul.bf16.gmra.mxu0 %v1223
      %v1629 = vpop.f32.mrf.mxu0
      %v1630 = vadd.f32 0.0, %v1629
      %v1631 = vpop.f32.mrf.mxu0
      %v1632 = vadd.f32 0.0, %v1631
      %1633 = vdwg.mxu0
      %1634 = vmatpush.bf16.msra.mxu0 %v1476
      %1635 = vmatpush.bf16.msra.mxu0 %v1475
      %1636 = vmatpush.bf16.msra.mxu0 %v1474
      %1637 = vmatpush.bf16.msra.mxu0 %v1473
      %1638 = vmatpush.bf16.msra.mxu0 %v1472
      %1639 = vmatpush.bf16.msra.mxu0 %v1471
      %1640 = vmatpush.bf16.msra.mxu0 %v1470
      %1641 = vmatpush.bf16.msra.mxu0 %v1469
      %1642 = vmatmul.bf16.gmra.mxu0 %v1306
      %v1643 = vpop.f32.mrf.mxu0
      %v1644 = vadd.f32 %v1555, %v1643
      %v1645 = vpop.f32.mrf.mxu0
      %v1646 = vadd.f32 %v1557, %v1645
      %1647 = vmatmul.bf16.gmra.mxu0 %v1309
      %v1648 = vpop.f32.mrf.mxu0
      %v1649 = vadd.f32 %v1560, %v1648
      %v1650 = vpop.f32.mrf.mxu0
      %v1651 = vadd.f32 %v1562, %v1650
      %1652 = vmatmul.bf16.gmra.mxu0 %v1312
      %v1653 = vpop.f32.mrf.mxu0
      %v1654 = vadd.f32 %v1565, %v1653
      %v1655 = vpop.f32.mrf.mxu0
      %v1656 = vadd.f32 %v1567, %v1655
      %1657 = vmatmul.bf16.gmra.mxu0 %v1315
      %v1658 = vpop.f32.mrf.mxu0
      %v1659 = vadd.f32 %v1570, %v1658
      %v1660 = vpop.f32.mrf.mxu0
      %v1661 = vadd.f32 %v1572, %v1660
      %1662 = vmatmul.bf16.gmra.mxu0 %v1318
      %v1663 = vpop.f32.mrf.mxu0
      %v1664 = vadd.f32 %v1575, %v1663
      %v1665 = vpop.f32.mrf.mxu0
      %v1666 = vadd.f32 %v1577, %v1665
      %1667 = vmatmul.bf16.gmra.mxu0 %v1321
      %v1668 = vpop.f32.mrf.mxu0
      %v1669 = vadd.f32 %v1580, %v1668
      %v1670 = vpop.f32.mrf.mxu0
      %v1671 = vadd.f32 %v1582, %v1670
      %1672 = vmatmul.bf16.gmra.mxu0 %v1324
      %v1673 = vpop.f32.mrf.mxu0
      %v1674 = vadd.f32 %v1585, %v1673
      %v1675 = vpop.f32.mrf.mxu0
      %v1676 = vadd.f32 %v1587, %v1675
      %1677 = vmatmul.bf16.gmra.mxu0 %v1327
      %v1678 = vpop.f32.mrf.mxu0
      %v1679 = vadd.f32 %v1590, %v1678
      %v1680 = vpop.f32.mrf.mxu0
      %v1681 = vadd.f32 %v1592, %v1680
      %1682 = vmatmul.bf16.gmra.mxu0 %v1330
      %v1683 = vpop.f32.mrf.mxu0
      %v1684 = vadd.f32 %v1595, %v1683
      %v1685 = vpop.f32.mrf.mxu0
      %v1686 = vadd.f32 %v1597, %v1685
      %1687 = vmatmul.bf16.gmra.mxu0 %v1333
      %v1688 = vpop.f32.mrf.mxu0
      %v1689 = vadd.f32 %v1600, %v1688
      %v1690 = vpop.f32.mrf.mxu0
      %v1691 = vadd.f32 %v1602, %v1690
      %1692 = vmatmul.bf16.gmra.mxu0 %v1336
      %v1693 = vpop.f32.mrf.mxu0
      %v1694 = vadd.f32 %v1605, %v1693
      %v1695 = vpop.f32.mrf.mxu0
      %v1696 = vadd.f32 %v1607, %v1695
      %1697 = vmatmul.bf16.gmra.mxu0 %v1339
      %v1698 = vpop.f32.mrf.mxu0
      %v1699 = vadd.f32 %v1610, %v1698
      %v1700 = vpop.f32.mrf.mxu0
      %v1701 = vadd.f32 %v1612, %v1700
      %1702 = vmatmul.bf16.gmra.mxu0 %v1342
      %v1703 = vpop.f32.mrf.mxu0
      %v1704 = vadd.f32 %v1615, %v1703
      %v1705 = vpop.f32.mrf.mxu0
      %v1706 = vadd.f32 %v1617, %v1705
      %1707 = vmatmul.bf16.gmra.mxu0 %v1345
      %v1708 = vpop.f32.mrf.mxu0
      %v1709 = vadd.f32 %v1620, %v1708
      %v1710 = vpop.f32.mrf.mxu0
      %v1711 = vadd.f32 %v1622, %v1710
      %1712 = vmatmul.bf16.gmra.mxu0 %v1348
      %v1713 = vpop.f32.mrf.mxu0
      %v1714 = vadd.f32 %v1625, %v1713
      %v1715 = vpop.f32.mrf.mxu0
      %v1716 = vadd.f32 %v1627, %v1715
      %1717 = vmatmul.bf16.gmra.mxu0 %v1351
      %v1718 = vpop.f32.mrf.mxu0
      %v1719 = vadd.f32 %v1630, %v1718
      %v1720 = vpop.f32.mrf.mxu0
      %v1721 = vadd.f32 %v1632, %v1720
      %1722 = vdwg.mxu0
      %1723 = vmatpush.bf16.msra.mxu0 0
      %1724 = vmatpush.bf16.msra.mxu0 0
      %1725 = vmatpush.bf16.msra.mxu0 0
      %1726 = vmatpush.bf16.msra.mxu0 0
      %1727 = vmatpush.bf16.msra.mxu0 0
      %1728 = vmatpush.bf16.msra.mxu0 0
      %1729 = vmatpush.bf16.msra.mxu0 %v1478
      %1730 = vmatpush.bf16.msra.mxu0 %v1477
      %1731 = vmatmul.bf16.gmra.mxu0 %v1498
      %v1732 = vpop.f32.mrf.mxu0
      %v1733 = vadd.f32 %v1644, %v1732
      %v1734 = vpop.f32.mrf.mxu0
      %v1735 = vadd.f32 %v1646, %v1734
      %1736 = vmatmul.bf16.gmra.mxu0 %v1501
      %v1737 = vpop.f32.mrf.mxu0
      %v1738 = vadd.f32 %v1649, %v1737
      %v1739 = vpop.f32.mrf.mxu0
      %v1740 = vadd.f32 %v1651, %v1739
      %1741 = vmatmul.bf16.gmra.mxu0 %v1504
      %v1742 = vpop.f32.mrf.mxu0
      %v1743 = vadd.f32 %v1654, %v1742
      %v1744 = vpop.f32.mrf.mxu0
      %v1745 = vadd.f32 %v1656, %v1744
      %1746 = vmatmul.bf16.gmra.mxu0 %v1507
      %v1747 = vpop.f32.mrf.mxu0
      %v1748 = vadd.f32 %v1659, %v1747
      %v1749 = vpop.f32.mrf.mxu0
      %v1750 = vadd.f32 %v1661, %v1749
      %1751 = vmatmul.bf16.gmra.mxu0 %v1510
      %v1752 = vpop.f32.mrf.mxu0
      %v1753 = vadd.f32 %v1664, %v1752
      %v1754 = vpop.f32.mrf.mxu0
      %v1755 = vadd.f32 %v1666, %v1754
      %1756 = vmatmul.bf16.gmra.mxu0 %v1513
      %v1757 = vpop.f32.mrf.mxu0
      %v1758 = vadd.f32 %v1669, %v1757
      %v1759 = vpop.f32.mrf.mxu0
      %v1760 = vadd.f32 %v1671, %v1759
      %1761 = vmatmul.bf16.gmra.mxu0 %v1516
      %v1762 = vpop.f32.mrf.mxu0
      %v1763 = vadd.f32 %v1674, %v1762
      %v1764 = vpop.f32.mrf.mxu0
      %v1765 = vadd.f32 %v1676, %v1764
      %1766 = vmatmul.bf16.gmra.mxu0 %v1519
      %v1767 = vpop.f32.mrf.mxu0
      %v1768 = vadd.f32 %v1679, %v1767
      %v1769 = vpop.f32.mrf.mxu0
      %v1770 = vadd.f32 %v1681, %v1769
      %1771 = vmatmul.bf16.gmra.mxu0 %v1522
      %v1772 = vpop.f32.mrf.mxu0
      %v1773 = vadd.f32 %v1684, %v1772
      %v1774 = vpop.f32.mrf.mxu0
      %v1775 = vadd.f32 %v1686, %v1774
      %1776 = vmatmul.bf16.gmra.mxu0 %v1525
      %v1777 = vpop.f32.mrf.mxu0
      %v1778 = vadd.f32 %v1689, %v1777
      %v1779 = vpop.f32.mrf.mxu0
      %v1780 = vadd.f32 %v1691, %v1779
      %1781 = vmatmul.bf16.gmra.mxu0 %v1528
      %v1782 = vpop.f32.mrf.mxu0
      %v1783 = vadd.f32 %v1694, %v1782
      %v1784 = vpop.f32.mrf.mxu0
      %v1785 = vadd.f32 %v1696, %v1784
      %1786 = vmatmul.bf16.gmra.mxu0 %v1531
      %v1787 = vpop.f32.mrf.mxu0
      %v1788 = vadd.f32 %v1699, %v1787
      %v1789 = vpop.f32.mrf.mxu0
      %v1790 = vadd.f32 %v1701, %v1789
      %1791 = vmatmul.bf16.gmra.mxu0 %v1534
      %v1792 = vpop.f32.mrf.mxu0
      %v1793 = vadd.f32 %v1704, %v1792
      %v1794 = vpop.f32.mrf.mxu0
      %v1795 = vadd.f32 %v1706, %v1794
      %1796 = vmatmul.bf16.gmra.mxu0 %v1537
      %v1797 = vpop.f32.mrf.mxu0
      %v1798 = vadd.f32 %v1709, %v1797
      %v1799 = vpop.f32.mrf.mxu0
      %v1800 = vadd.f32 %v1711, %v1799
      %1801 = vmatmul.bf16.gmra.mxu0 %v1540
      %v1802 = vpop.f32.mrf.mxu0
      %v1803 = vadd.f32 %v1714, %v1802
      %v1804 = vpop.f32.mrf.mxu0
      %v1805 = vadd.f32 %v1716, %v1804
      %1806 = vmatmul.bf16.gmra.mxu0 %v1543
      %v1807 = vpop.f32.mrf.mxu0
      %v1808 = vadd.f32 %v1719, %v1807
      %v1809 = vpop.f32.mrf.mxu0
      %v1810 = vadd.f32 %v1721, %v1809
      %1811 = vdwg.mxu0
      %v1812 = vpack.c.bf16 %v1733, %v1733
      %v1813 = vpack.c.bf16 %v1735, %v1735
      %v1814 = vpack.c.bf16 %v1738, %v1738
      %v1815 = vpack.c.bf16 %v1740, %v1740
      %v1816 = vpack.c.bf16 %v1743, %v1743
      %v1817 = vpack.c.bf16 %v1745, %v1745
      %v1818 = vpack.c.bf16 %v1748, %v1748
      %v1819 = vpack.c.bf16 %v1750, %v1750
      %v1820 = vpack.c.bf16 %v1753, %v1753
      %v1821 = vpack.c.bf16 %v1755, %v1755
      %v1822 = vpack.c.bf16 %v1758, %v1758
      %v1823 = vpack.c.bf16 %v1760, %v1760
      %v1824 = vpack.c.bf16 %v1763, %v1763
      %v1825 = vpack.c.bf16 %v1765, %v1765
      %v1826 = vpack.c.bf16 %v1768, %v1768
      %v1827 = vpack.c.bf16 %v1770, %v1770
      %v1828 = vpack.c.bf16 %v1773, %v1773
      %v1829 = vpack.c.bf16 %v1775, %v1775
      %v1830 = vpack.c.bf16 %v1778, %v1778
      %v1831 = vpack.c.bf16 %v1780, %v1780
      %v1832 = vpack.c.bf16 %v1783, %v1783
      %v1833 = vpack.c.bf16 %v1785, %v1785
      %v1834 = vpack.c.bf16 %v1788, %v1788
      %v1835 = vpack.c.bf16 %v1790, %v1790
      %v1836 = vpack.c.bf16 %v1793, %v1793
      %v1837 = vpack.c.bf16 %v1795, %v1795
      %v1838 = vpack.c.bf16 %v1798, %v1798
      %v1839 = vpack.c.bf16 %v1800, %v1800
      %v1840 = vpack.c.bf16 %v1803, %v1803
      %v1841 = vpack.c.bf16 %v1805, %v1805
      %v1842 = vpack.c.bf16 %v1808, %v1808
      %v1843 = vpack.c.bf16 %v1810, %v1810
      %1844 = vst [vmem:[%s205] sm:$0xf] %v1812
      %1845 = vst [vmem:[%s205 + $0x4] sm:$0xf] %v1813
      %1846 = vst [vmem:[%s205 + $0x8] sm:$0xf] %v1814
      %1847 = vst [vmem:[%s205 + $0xc] sm:$0xf] %v1815
      %1848 = vst [vmem:[%s205 + $0x10] sm:$0xf] %v1816
      %1849 = vst [vmem:[%s205 + $0x14] sm:$0xf] %v1817
      %1850 = vst [vmem:[%s205 + $0x18] sm:$0xf] %v1818
      %1851 = vst [vmem:[%s205 + $0x1c] sm:$0xf] %v1819
      %1852 = vst [vmem:[%s205 + $0x20] sm:$0xf] %v1820
      %1853 = vst [vmem:[%s205 + $0x24] sm:$0xf] %v1821
      %1854 = vst [vmem:[%s205 + $0x28] sm:$0xf] %v1822
      %1855 = vst [vmem:[%s205 + $0x2c] sm:$0xf] %v1823
      %1856 = vst [vmem:[%s205 + $0x30] sm:$0xf] %v1824
      %1857 = vst [vmem:[%s205 + $0x34] sm:$0xf] %v1825
      %1858 = vst [vmem:[%s205 + $0x38] sm:$0xf] %v1826
      %1859 = vst [vmem:[%s205 + $0x3c] sm:$0xf] %v1827
      %1860 = vst [vmem:[%s205 + $0x40] sm:$0xf] %v1828
      %1861 = vst [vmem:[%s205 + $0x44] sm:$0xf] %v1829
      %1862 = vst [vmem:[%s205 + $0x48] sm:$0xf] %v1830
      %1863 = vst [vmem:[%s205 + $0x4c] sm:$0xf] %v1831
      %1864 = vst [vmem:[%s205 + $0x50] sm:$0xf] %v1832
      %1865 = vst [vmem:[%s205 + $0x54] sm:$0xf] %v1833
      %1866 = vst [vmem:[%s205 + $0x58] sm:$0xf] %v1834
      %1867 = vst [vmem:[%s205 + $0x5c] sm:$0xf] %v1835
      %1868 = vst [vmem:[%s205 + $0x60] sm:$0xf] %v1836
      %1869 = vst [vmem:[%s205 + $0x64] sm:$0xf] %v1837
      %1870 = vst [vmem:[%s205 + $0x68] sm:$0xf] %v1838
      %1871 = vst [vmem:[%s205 + $0x6c] sm:$0xf] %v1839
      %1872 = vst [vmem:[%s205 + $0x70] sm:$0xf] %v1840
      %1873 = vst [vmem:[%s205 + $0x74] sm:$0xf] %v1841
      %1874 = vst [vmem:[%s205 + $0x78] sm:$0xf] %v1842
      %1875 = vst [vmem:[%s205 + $0x7c] sm:$0xf] %v1843
      %v1876 = vadd.f32 %v1733, %v1735
      %v1877 = vadd.f32 %v1876, %v1738
      %v1878 = vadd.f32 %v1877, %v1740
      %v1879 = vadd.f32 %v1878, %v1743
      %v1880 = vadd.f32 %v1879, %v1745
      %v1881 = vadd.f32 %v1880, %v1748
      %v1882 = vadd.f32 %v1881, %v1750
      %v1883 = vadd.f32 %v1882, %v1753
      %v1884 = vadd.f32 %v1883, %v1755
      %v1885 = vadd.f32 %v1884, %v1758
      %v1886 = vadd.f32 %v1885, %v1760
      %v1887 = vadd.f32 %v1886, %v1763
      %v1888 = vadd.f32 %v1887, %v1765
      %v1889 = vadd.f32 %v1888, %v1768
      %v1890 = vadd.f32 %v1889, %v1770
      %v1891 = vadd.f32 %v1890, %v1773
      %v1892 = vadd.f32 %v1891, %v1775
      %v1893 = vadd.f32 %v1892, %v1778
      %v1894 = vadd.f32 %v1893, %v1780
      %v1895 = vadd.f32 %v1894, %v1783
      %v1896 = vadd.f32 %v1895, %v1785
      %v1897 = vadd.f32 %v1896, %v1788
      %v1898 = vadd.f32 %v1897, %v1790
      %v1899 = vadd.f32 %v1898, %v1793
      %v1900 = vadd.f32 %v1899, %v1795
      %v1901 = vadd.f32 %v1900, %v1798
      %v1902 = vadd.f32 %v1901, %v1800
      %v1903 = vadd.f32 %v1902, %v1803
      %v1904 = vadd.f32 %v1903, %v1805
      %v1905 = vadd.f32 %v1904, %v1808
      %v1906 = vadd.f32 %v1905, %v1810
      %v1907 = vrot.slane %v1906, 4
      %v1908 = vadd.f32 %v1906, %v1907
      %v1909 = vrot.slane %v1908, 2
      %v1910 = vadd.f32 %v1908, %v1909
      %v1911 = vrot.slane %v1910, 1
      %v1912 = vadd.f32 %v1910, %v1911
      %1913 = vst [vmem:[%s214] sm:$0x1] %v1912
      %v1914 = vmul.f32 %v1733, %v1733
      %v1915 = vmul.f32 %v1735, %v1735
      %v1916 = vmul.f32 %v1738, %v1738
      %v1917 = vmul.f32 %v1740, %v1740
      %v1918 = vmul.f32 %v1743, %v1743
      %v1919 = vmul.f32 %v1745, %v1745
      %v1920 = vmul.f32 %v1748, %v1748
      %v1921 = vmul.f32 %v1750, %v1750
      %v1922 = vmul.f32 %v1753, %v1753
      %v1923 = vmul.f32 %v1755, %v1755
      %v1924 = vmul.f32 %v1758, %v1758
      %v1925 = vmul.f32 %v1760, %v1760
      %v1926 = vmul.f32 %v1763, %v1763
      %v1927 = vmul.f32 %v1765, %v1765
      %v1928 = vmul.f32 %v1768, %v1768
      %v1929 = vmul.f32 %v1770, %v1770
      %v1930 = vmul.f32 %v1773, %v1773
      %v1931 = vmul.f32 %v1775, %v1775
      %v1932 = vmul.f32 %v1778, %v1778
      %v1933 = vmul.f32 %v1780, %v1780
      %v1934 = vmul.f32 %v1783, %v1783
      %v1935 = vmul.f32 %v1785, %v1785
      %v1936 = vmul.f32 %v1788, %v1788
      %v1937 = vmul.f32 %v1790, %v1790
      %v1938 = vmul.f32 %v1793, %v1793
      %v1939 = vmul.f32 %v1795, %v1795
      %v1940 = vmul.f32 %v1798, %v1798
      %v1941 = vmul.f32 %v1800, %v1800
      %v1942 = vmul.f32 %v1803, %v1803
      %v1943 = vmul.f32 %v1805, %v1805
      %v1944 = vmul.f32 %v1808, %v1808
      %v1945 = vmul.f32 %v1810, %v1810
      %v1946 = vadd.f32 %v1914, %v1915
      %v1947 = vadd.f32 %v1946, %v1916
      %v1948 = vadd.f32 %v1947, %v1917
      %v1949 = vadd.f32 %v1948, %v1918
      %v1950 = vadd.f32 %v1949, %v1919
      %v1951 = vadd.f32 %v1950, %v1920
      %v1952 = vadd.f32 %v1951, %v1921
      %v1953 = vadd.f32 %v1952, %v1922
      %v1954 = vadd.f32 %v1953, %v1923
      %v1955 = vadd.f32 %v1954, %v1924
      %v1956 = vadd.f32 %v1955, %v1925
      %v1957 = vadd.f32 %v1956, %v1926
      %v1958 = vadd.f32 %v1957, %v1927
      %v1959 = vadd.f32 %v1958, %v1928
      %v1960 = vadd.f32 %v1959, %v1929
      %v1961 = vadd.f32 %v1960, %v1930
      %v1962 = vadd.f32 %v1961, %v1931
      %v1963 = vadd.f32 %v1962, %v1932
      %v1964 = vadd.f32 %v1963, %v1933
      %v1965 = vadd.f32 %v1964, %v1934
      %v1966 = vadd.f32 %v1965, %v1935
      %v1967 = vadd.f32 %v1966, %v1936
      %v1968 = vadd.f32 %v1967, %v1937
      %v1969 = vadd.f32 %v1968, %v1938
      %v1970 = vadd.f32 %v1969, %v1939
      %v1971 = vadd.f32 %v1970, %v1940
      %v1972 = vadd.f32 %v1971, %v1941
      %v1973 = vadd.f32 %v1972, %v1942
      %v1974 = vadd.f32 %v1973, %v1943
      %v1975 = vadd.f32 %v1974, %v1944
      %v1976 = vadd.f32 %v1975, %v1945
      %v1977 = vrot.slane %v1976, 4
      %v1978 = vadd.f32 %v1976, %v1977
      %v1979 = vrot.slane %v1978, 2
      %v1980 = vadd.f32 %v1978, %v1979
      %v1981 = vrot.slane %v1980, 1
      %v1982 = vadd.f32 %v1980, %v1981
      %1983 = vst [vmem:[%s214 + $0x1] sm:$0x1] %v1982
      %s1984 = smul.u32 32, %s20
      %p1985 = scmp.lt.s32.totalorder %s19, 1
      %s1986 = scalar_select %p1985, %s19, 1
      %p1987 = scmp.lt.s32.totalorder %s1984, 127
      %s1988 = scalar_select %p1987, %s1984, 127
      %s1989 = smul.addr %s1986, 128
      %s1990 = sadd.s32 %s1988, %s1989
      %s1991 = smul.addr %s1990, 4
      %s1992 = scalar_lea.vmem %s2, %s1991
      %p1993 = scmp.lt.s32.totalorder %s19, 1
      %s1994 = scalar_select %p1993, %s19, 1
      %p1995 = scmp.lt.s32.totalorder %s20, 3
      %s1996 = scalar_select %p1995, %s20, 3
      %s1997 = smul.addr %s1994, 4
      %s1998 = sadd.s32 %s1996, %s1997
      %s1999 = smul.addr %s1998, 2
      %s2000 = scalar_lea.vmem %s3, %s1999
      // Predicated region
      $region29: #{basic_conv_forward.2} parent=27 // pred_check
        %p2001 = pneg %p94
      $region30: #{basic_conv_forward.2} parent=27 // pred_check_branch
        %2003 = sbr.rel (%p2001) target = $region32
      $region31: #{basic_conv_forward.2} parent=27 // pred_region
        %s2004 = smul.u32 32, %s20
      $region32: #{basic_conv_forward.2} parent=27 // pred_fallthru
        _
      // Predicated region
      $region33: #{basic_conv_forward.2} parent=27 // pred_check
        %p2005 = pneg %p122
      $region34: #{basic_conv_forward.2} parent=27 // pred_check_branch
        %2007 = sbr.rel (%p2005) target = $region36
      $region35: #{basic_conv_forward.2} parent=27 // pred_region
        _
      $region36: #{basic_conv_forward.2} parent=27 // pred_fallthru
        _
    $region28: #{basic_conv_forward.2} parent=5 // pred_fallthru
      _
    %p2008 = scmp.le.s32.totalorder 2, %s10
    // Predicated region
    $region37: #{basic_conv_forward.2} parent=5 // pred_check
      %p2009 = pneg %p2008
    $region38: #{basic_conv_forward.2} parent=5 // pred_check_branch
      %2011 = sbr.rel (%p2009) target = $region40
    $region39: #{basic_conv_forward.2} parent=5 // pred_region
      %s2012 = ssub.s32 %s10, 2
      // Predicated region
      $region41: #{basic_conv_forward.2} parent=39 // pred_check
        %p2013 = pneg %p100
      $region42: #{basic_conv_forward.2} parent=39 // pred_check_branch
        %2015 = sbr.rel (%p2013) target = $region44
      $region43: #{basic_conv_forward.2} parent=39 // pred_region
        %s2016 = smul.u32 32, %s22
        %p2017 = scmp.lt.s32.totalorder %s21, 1
        %s2018 = scalar_select %p2017, %s21, 1
        %p2019 = scmp.lt.s32.totalorder %s2016, 127
        %s2020 = scalar_select %p2019, %s2016, 127
        %s2021 = smul.addr %s2018, 128
        %s2022 = sadd.s32 %s2020, %s2021
        %s2023 = smul.addr %s2022, 4
        %s2024 = scalar_lea.vmem %s2, %s2023
      $region44: #{basic_conv_forward.2} parent=39 // pred_fallthru
        _
      // Predicated region
      $region45: #{basic_conv_forward.2} parent=39 // pred_check
        %p2025 = pneg %p128
      $region46: #{basic_conv_forward.2} parent=39 // pred_check_branch
        %2027 = sbr.rel (%p2025) target = $region48
      $region47: #{basic_conv_forward.2} parent=39 // pred_region
        %p2028 = scmp.lt.s32.totalorder %s21, 1
        %s2029 = scalar_select %p2028, %s21, 1
        %p2030 = scmp.lt.s32.totalorder %s22, 3
        %s2031 = scalar_select %p2030, %s22, 3
        %s2032 = smul.addr %s2029, 4
        %s2033 = sadd.s32 %s2031, %s2032
        %s2034 = smul.addr %s2033, 2
        %s2035 = scalar_lea.vmem %s3, %s2034
      $region48: #{basic_conv_forward.2} parent=39 // pred_fallthru
        _
    $region40: #{basic_conv_forward.2} parent=5 // pred_fallthru
      _
  $region6: #{basic_conv_forward.2} parent=0 // loop_footer
    %s14 = sadd.s32 1, %s10
  $region7: #{basic_conv_forward.2} parent=0 // loop_footer_branch
    %9 = sbr.rel target = $region3
  $region8: #{basic_conv_forward.2} parent=0 // loop_exit
    _

</llo_original>
